<compile_context>
chip_gen: v6e
topology: v6e:2x2x1
jax: 0.10.0
libtpu: 0.0.40
codegen_flags: <defaults>
</compile_context>

<pallas_src>
import math
import functools

import jax
import jax.numpy as jnp
from jax.experimental import pallas as pl
from jax.experimental.pallas import tpu as pltpu


_MASK_NEG = -1e30   # finite mask sentinel (cannot overflow to -inf / NaN)


def _round_up(x, m):
    return ((x + m - 1) // m) * m


def _padded_vmem_bytes(shape, dtype):
    """Bytes one VMEM buffer of `shape` occupies ((8,128) minor-dim padding)."""
    if not shape:
        return 4
    s = [int(d) for d in shape]
    s[-1] = _round_up(s[-1], 128)
    if len(s) >= 2:
        s[-2] = _round_up(s[-2], 8)
    n = 1
    for d in s:
        n *= d
    return n * jnp.dtype(dtype).itemsize


def _vmem_limit_bytes(buffer_bytes, scratch_bytes=0):
    """Scoped-VMEM request: double-buffered blocks + scratch + headroom,
    capped below the physical per-core VMEM (64 MiB on v7x, 128 MiB v5e/v6e)."""
    try:
        phys = int(pltpu.get_tpu_info().vmem_capacity_bytes)
    except Exception:
        phys = 64 << 20            # conservative fallback (v7x per-core size)
    cap = phys - (8 << 20)
    est = 2 * buffer_bytes + scratch_bytes + (4 << 20)
    return int(min(cap, max(16 << 20, est)))


# --------------------------------------------------------------------------
# Kernel 1: fused K / V / Q projections + head split at store time
# --------------------------------------------------------------------------
def _proj_split_kernel(k_ref, v_ref, q_ref, w_ref, b_ref,
                       ko_ref, vo_ref, qo_ref):
    """y_j = x_j @ W_j^T + b_j for j in {k, v, q} on one (batch, seq-tile)
    block.  Weights are pre-transposed / stacked and the query scaling is
    folded into W_q / b_q on the host.  Output is written directly in the
    head-split (H, ts, hd) layout via per-head lane-slice stores (rides the
    copy/XLU slots of the GEMM-bound kernel instead of an XLA transpose)."""
    num_heads = ko_ref.shape[1]
    head_size = ko_ref.shape[3]
    for j, (x_ref, o_ref) in enumerate(
            ((k_ref, ko_ref), (v_ref, vo_ref), (q_ref, qo_ref))):
        x = x_ref[0].astype(w_ref.dtype)                        # (ts, D) bf16
        y = jnp.dot(x, w_ref[j], preferred_element_type=jnp.float32)
        y = (y + b_ref[j]).astype(o_ref.dtype)                  # (ts, D) bf16
        for h in range(num_heads):                              # head split
            o_ref[0, h] = y[:, h * head_size:(h + 1) * head_size]


# --------------------------------------------------------------------------
# Kernel 2: flash-style attention over KV tiles + fused output projection
# --------------------------------------------------------------------------
def _attention_kernel(q_ref, k_ref, v_ref, mask_ref, wo_ref, bo_ref, o_ref,
                      m_sc, l_sc, acc_sc):
    ki = pl.program_id(2)

    @pl.when(ki == 0)
    def _init():
        m_sc[...] = jnp.full(m_sc.shape, -jnp.inf, m_sc.dtype)
        l_sc[...] = jnp.zeros(l_sc.shape, l_sc.dtype)
        acc_sc[...] = jnp.zeros(acc_sc.shape, acc_sc.dtype)

    # q/k/v arrive already in bf16 + head-split layout; no per-step casts.
    q = q_ref[0]                                    # (H, tq, hd), pre-scaled
    k = k_ref[0]                                    # (H, tk, hd)
    v = v_ref[0]                                    # (H, tk, hd)

    s = jnp.einsum('hqd,hkd->hqk', q, k,
                   preferred_element_type=jnp.float32)   # (H, tq, tk) f32

    # Single select (1 = keep); no additive-bias temporary on the VPU slot.
    keep = mask_ref[0][None, :, :] > 0                   # (1, 1, tk)
    s = jnp.where(keep, s, jnp.float32(_MASK_NEG))

    # Online softmax update (all elementwise math stays in f32).
    m_prev = m_sc[...]
    m_new = jnp.maximum(m_prev, s.max(axis=-1, keepdims=True))
    alpha = jnp.exp(m_prev - m_new)
    p = jnp.exp(s - m_new)
    l_sc[...] = alpha * l_sc[...] + p.sum(axis=-1, keepdims=True)
    acc_sc[...] = alpha * acc_sc[...] + jnp.einsum(
        'hqk,hkd->hqd', p.astype(v.dtype), v,
        preferred_element_type=jnp.float32)
    m_sc[...] = m_new

    # TODO(synk): nn.Dropout(p=0.1) on the attention weights is identity in
    # eval mode; training-time dropout (pltpu.prng_*) is not implemented.

    @pl.when(ki == pl.num_programs(2) - 1)
    def _finalize():
        inv_l = pl.reciprocal(l_sc[...], approx=True)    # EUP, off the hot loop
        ctx = (acc_sc[...] * inv_l).astype(wo_ref.dtype)  # (H, tq, hd)
        wo = wo_ref[...]                                  # (H, hd, D)
        # Fused output projection: per-head (tq,hd)x(hd,D) GEMMs accumulated
        # directly into one f32 (tq, D) buffer — the head reduction happens in
        # the accumulator; no (H, tq, D) temporary or separate head-sum pass.
        out = jnp.dot(ctx[0], wo[0], preferred_element_type=jnp.float32)
        for h in range(1, ctx.shape[0]):
            out = out + jnp.dot(ctx[h], wo[h],
                                preferred_element_type=jnp.float32)
        o_ref[0] = (out + bo_ref[...]).astype(o_ref.dtype)


def multi_head_attention(k, v, q, mask, params, *, num_heads,
                         compute_dtype=jnp.bfloat16, seq_tile=256):
    """k, v, q: (B, S, D) float32; mask: (B, 1, S), nonzero = attend."""
    B, S, D = k.shape
    assert D % num_heads == 0
    H = num_heads
    hd = D // H
    out_dtype = q.dtype

    wk, bk, wv, bv, wq, bq, wo, bo = params
    scale = 1.0 / math.sqrt(hd)

    # Host-side weight prep only (no activation copies): pre-transpose
    # (nn.Linear stores (out, in)), stack the three projection weights, fold
    # the query scaling into wq/bq, cast MXU operands to bf16.
    w_stack = jnp.stack([wk.T, wv.T, wq.T * scale]).astype(compute_dtype)  # (3,D,D)
    b_stack = jnp.stack([bk, bv, bq * scale]).reshape(3, 1, D).astype(jnp.float32)
    wo_h = wo.T.reshape(H, hd, D).astype(compute_dtype)                    # (H,hd,D)
    bo2 = bo.reshape(1, D).astype(jnp.float32)

    mask = mask.astype(jnp.int32)

    # Sequence tiling (one tile size serves projection, q-tiles and kv-tiles):
    #   * S <= seq_tile: full-extent blocks (always legal, no padding).
    #   * otherwise: tile of 128-multiple width; zero-pad S to a tile multiple
    #     (padded keys are masked out, padded query rows are sliced off).
    if S <= seq_tile:
        ts, s_pad = S, S
    else:
        ts = _round_up(seq_tile, 128)
        s_pad = _round_up(S, ts)
        if s_pad != S:
            pad = s_pad - S
            k = jnp.pad(k, ((0, 0), (0, pad), (0, 0)))
            v = jnp.pad(v, ((0, 0), (0, pad), (0, 0)))
            q = jnp.pad(q, ((0, 0), (0, pad), (0, 0)))
            mask = jnp.pad(mask, ((0, 0), (0, 0), (0, pad)))   # 0 = masked
    n_tiles = s_pad // ts

    # ---- kernel 1: fused K/V/Q projections + head split --------------------
    proj_buf = (3 * _padded_vmem_bytes((ts, D), k.dtype)
                + _padded_vmem_bytes((3, D, D), compute_dtype)
                + _padded_vmem_bytes((3, 1, D), jnp.float32)
                + 3 * _padded_vmem_bytes((H, ts, hd), compute_dtype))
    proj_out = jax.ShapeDtypeStruct((B, H, s_pad, hd), compute_dtype)

    # TODO(synk): the grid-invariant weight/bias blocks (and kernel-2's Wo/bo)
    # could be single-buffered with pipeline_mode=pl.Buffered(1) to shave a
    # little more VMEM on v7x.
    k_h, v_h, q_h = pl.pallas_call(
        _proj_split_kernel,
        out_shape=(proj_out, proj_out, proj_out),
        grid_spec=pltpu.PrefetchScalarGridSpec(
            num_scalar_prefetch=0,
            grid=(B, n_tiles),
            in_specs=[
                pl.BlockSpec((1, ts, D), lambda b, si: (b, si, 0)),
                pl.BlockSpec((1, ts, D), lambda b, si: (b, si, 0)),
                pl.BlockSpec((1, ts, D), lambda b, si: (b, si, 0)),
                pl.BlockSpec((3, D, D), lambda b, si: (0, 0, 0)),
                pl.BlockSpec((3, 1, D), lambda b, si: (0, 0, 0)),
            ],
            out_specs=(
                pl.BlockSpec((1, H, ts, hd), lambda b, si: (b, 0, si, 0)),
                pl.BlockSpec((1, H, ts, hd), lambda b, si: (b, 0, si, 0)),
                pl.BlockSpec((1, H, ts, hd), lambda b, si: (b, 0, si, 0)),
            ),
        ),
        compiler_params=pltpu.CompilerParams(
            dimension_semantics=("parallel", "parallel"),
            vmem_limit_bytes=_vmem_limit_bytes(proj_buf)),
    )(k, v, q, w_stack, b_stack)

    # ---- kernel 2: flash attention over KV tiles + fused Wo ----------------
    # Layout note: q/k/v/acc blocks keep head_size on the lane axis, so
    # hd < 128 leaves lanes unused (fixed layout tax); the (.., tk) score /
    # probability tensors are the lane-dense ones.
    attn_buf = (3 * _padded_vmem_bytes((H, ts, hd), compute_dtype)
                + _padded_vmem_bytes((1, 1, ts), jnp.int32)
                + _padded_vmem_bytes((H, hd, D), compute_dtype)
                + _padded_vmem_bytes((1, D), jnp.float32)
                + _padded_vmem_bytes((ts, D), out_dtype))
    attn_scratch = (2 * _padded_vmem_bytes((H, ts, 1), jnp.float32)
                    + _padded_vmem_bytes((H, ts, hd), jnp.float32))

    out = pl.pallas_call(
        _attention_kernel,
        out_shape=jax.ShapeDtypeStruct((B, s_pad, D), out_dtype),
        grid_spec=pltpu.PrefetchScalarGridSpec(
            num_scalar_prefetch=0,
            grid=(B, n_tiles, n_tiles),
            in_specs=[
                pl.BlockSpec((1, H, ts, hd), lambda b, qi, ki: (b, 0, qi, 0)),
                pl.BlockSpec((1, H, ts, hd), lambda b, qi, ki: (b, 0, ki, 0)),
                pl.BlockSpec((1, H, ts, hd), lambda b, qi, ki: (b, 0, ki, 0)),
                pl.BlockSpec((1, 1, ts), lambda b, qi, ki: (b, 0, ki)),
                pl.BlockSpec((H, hd, D), lambda b, qi, ki: (0, 0, 0)),
                pl.BlockSpec((1, D), lambda b, qi, ki: (0, 0)),
            ],
            out_specs=pl.BlockSpec((1, ts, D), lambda b, qi, ki: (b, qi, 0)),
            scratch_shapes=[
                pltpu.VMEM((H, ts, 1), jnp.float32),    # running max
                pltpu.VMEM((H, ts, 1), jnp.float32),    # running denom
                pltpu.VMEM((H, ts, hd), jnp.float32),   # running context
            ],
        ),
        compiler_params=pltpu.CompilerParams(
            dimension_semantics=("parallel", "parallel", "arbitrary"),
            vmem_limit_bytes=_vmem_limit_bytes(attn_buf, attn_scratch)),
    )(q_h, k_h, v_h, mask, wo_h, bo2)

    if s_pad != S:
        out = out[:, :S, :]
    return out


def init_params(key, size):
    """Deterministic params mimicking torch.nn.Linear init (uniform +/- 1/sqrt(in))."""
    bound = 1.0 / math.sqrt(size)
    keys = jax.random.split(key, 8)

    def u(kk, shape):
        return jax.random.uniform(kk, shape, jnp.float32, -bound, bound)

    wk, bk = u(keys[0], (size, size)), u(keys[1], (size,))
    wv, bv = u(keys[2], (size, size)), u(keys[3], (size,))
    wq, bq = u(keys[4], (size, size)), u(keys[5], (size,))
    wo, bo = u(keys[6], (size, size)), u(keys[7], (size,))
    return (wk, bk, wv, bv, wq, bq, wo, bo)


def _reference(k, v, q, mask, params, *, num_heads):
    """Pure-JAX f32 reference matching the PyTorch module (eval mode)."""
    wk, bk, wv, bv, wq, bq, wo, bo = params
    B, S, D = k.shape
    hd = D // num_heads
    K = k @ wk.T + bk
    V = v @ wv.T + bv
    Q = (q @ wq.T + bq) / math.sqrt(hd)

    def split(x):
        return x.reshape(B, S, num_heads, hd).transpose(0, 2, 1, 3)

    K, V, Q = split(K), split(V), split(Q)
    s = jnp.einsum('bhqd,bhkd->bhqk', Q, K)
    s = jnp.where(mask[:, None, :, :] > 0, s, _MASK_NEG)
    p = jax.nn.softmax(s, axis=-1)
    ctx = jnp.einsum('bhqk,bhkd->bhqd', p, V)
    ctx = ctx.transpose(0, 2, 1, 3).reshape(B, S, D)
    return ctx @ wo.T + bo


if __name__ == "__main__":
    B, S, D, H = 2, 8, 32, 4

    root = jax.random.PRNGKey(0)
    k_key, v_key, q_key, p_key = jax.random.split(root, 4)

    k = jax.random.normal(k_key, (B, S, D), jnp.float32)
    v = jax.random.normal(v_key, (B, S, D), jnp.float32)
    q = jax.random.normal(q_key, (B, S, D), jnp.float32)

    # mask: (B, 1, S), 1 = attend, 0 = masked (last 2 keys of batch 1 masked)
    mask = jnp.ones((B, 1, S), jnp.int32)
    mask = mask.at[1, 0, -2:].set(0)

    params = init_params(p_key, D)

    mha = jax.jit(functools.partial(multi_head_attention, num_heads=H))
    out = mha(k, v, q, mask, params)
    jax.block_until_ready(out)
    assert out.shape == (B, S, D)

    # bf16 MXU operands (f32 accumulation) + approx reciprocal give ~1e-2
    # drift; structural bugs (wrong head mapping / mask) would be O(1), so a
    # 0.1 abs + 0.1 relative bound is tight enough to catch them.
    ref = _reference(k, v, q, mask, params, num_heads=H)
    abs_err = float(jnp.max(jnp.abs(out - ref)))
    rel_err = abs_err / (float(jnp.max(jnp.abs(ref))) + 1e-6)
    assert abs_err < 0.1 and rel_err < 0.1, (
        f"kernel/reference mismatch: abs={abs_err}, rel={rel_err}")

    print("KERNEL_OK")
</pallas_src>

<mosaic_0001>
module attributes {stable_mosaic.version = 11 : i64} {
  func.func @_proj_split_kernel(%arg0: i32, %arg1: i32, %arg2: memref<1x8x32xf32, #tpu.memory_space<vmem>>, %arg3: memref<1x8x32xf32, #tpu.memory_space<vmem>>, %arg4: memref<1x8x32xf32, #tpu.memory_space<vmem>>, %arg5: memref<3x32x32xbf16, #tpu.memory_space<vmem>>, %arg6: memref<3x1x32xf32, #tpu.memory_space<vmem>>, %arg7: memref<1x4x8x8xbf16, #tpu.memory_space<vmem>>, %arg8: memref<1x4x8x8xbf16, #tpu.memory_space<vmem>>, %arg9: memref<1x4x8x8xbf16, #tpu.memory_space<vmem>>) attributes {dimension_semantics = [#tpu.dimension_semantics<parallel>, #tpu.dimension_semantics<parallel>], iteration_bounds = array<i64: 2, 1>, scalar_prefetch = 0 : i64, scratch_operands = 0 : i64, tpu.core_type = #tpu.core_type<tc>, window_params = [{transform_indices = @transform_0, window_bounds = array<i64: 1, 8, 32>}, {transform_indices = @transform_1, window_bounds = array<i64: 1, 8, 32>}, {transform_indices = @transform_2, window_bounds = array<i64: 1, 8, 32>}, {pipeline_mode = #tpu.pipeline_mode<synchronous>, transform_indices = @transform_3, window_bounds = array<i64: 3, 32, 32>}, {pipeline_mode = #tpu.pipeline_mode<synchronous>, transform_indices = @transform_4, window_bounds = array<i64: 3, 1, 32>}, {transform_indices = @transform_5, window_bounds = array<i64: 1, 4, 8, 8>}, {transform_indices = @transform_6, window_bounds = array<i64: 1, 4, 8, 8>}, {transform_indices = @transform_7, window_bounds = array<i64: 1, 4, 8, 8>}]} {
    %c0 = arith.constant 0 : index
    %c0_0 = arith.constant 0 : index
    %c0_1 = arith.constant 0 : index
    %0 = vector.load %arg2[%c0, %c0_0, %c0_1] : memref<1x8x32xf32, #tpu.memory_space<vmem>>, vector<1x8x32xf32>
    %1 = vector.shape_cast %0 : vector<1x8x32xf32> to vector<8x32xf32>
    %2 = arith.truncf %1 : vector<8x32xf32> to vector<8x32xbf16>
    %c0_2 = arith.constant 0 : index
    %c0_3 = arith.constant 0 : index
    %c0_4 = arith.constant 0 : index
    %3 = vector.load %arg5[%c0_2, %c0_3, %c0_4] : memref<3x32x32xbf16, #tpu.memory_space<vmem>>, vector<1x32x32xbf16>
    %4 = vector.shape_cast %3 : vector<1x32x32xbf16> to vector<32x32xbf16>
    %cst = arith.constant dense<0.000000e+00> : vector<8x32xf32>
    %5 = tpu.matmul %2, %4, %cst {dimension_numbers = #tpu.dot_dimension_numbers<[1], [0], [0], [1], [0, 0, 1, 1], [], []>} : vector<8x32xbf16>, vector<32x32xbf16>, vector<8x32xf32> -> vector<8x32xf32>
    %c0_5 = arith.constant 0 : index
    %c0_6 = arith.constant 0 : index
    %c0_7 = arith.constant 0 : index
    %6 = vector.load %arg6[%c0_5, %c0_6, %c0_7] : memref<3x1x32xf32, #tpu.memory_space<vmem>>, vector<1x1x32xf32>
    %7 = vector.shape_cast %6 : vector<1x1x32xf32> to vector<1x32xf32>
    %8 = vector.broadcast %7 : vector<1x32xf32> to vector<8x32xf32>
    %9 = arith.addf %5, %8 : vector<8x32xf32>
    %10 = arith.truncf %9 : vector<8x32xf32> to vector<8x32xbf16>
    %11 = vector.extract_strided_slice %10 {offsets = [0, 0], sizes = [8, 8], strides = [1, 1]} : vector<8x32xbf16> to vector<8x8xbf16>
    %c0_8 = arith.constant 0 : index
    %c0_9 = arith.constant 0 : index
    %c0_10 = arith.constant 0 : index
    %c0_11 = arith.constant 0 : index
    %12 = vector.load %arg7[%c0_8, %c0_9, %c0_10, %c0_11] : memref<1x4x8x8xbf16, #tpu.memory_space<vmem>>, vector<1x1x8x8xbf16>
    %13 = vector.shape_cast %12 : vector<1x1x8x8xbf16> to vector<8x8xbf16>
    %14 = vector.shape_cast %11 : vector<8x8xbf16> to vector<1x1x8x8xbf16>
    tpu.vector_store %arg7[%c0_8, %c0_9, %c0_10, %c0_11], %14 {strides = array<i32>} : memref<1x4x8x8xbf16, #tpu.memory_space<vmem>>, vector<1x1x8x8xbf16>,
    %15 = vector.extract_strided_slice %10 {offsets = [0, 8], sizes = [8, 8], strides = [1, 1]} : vector<8x32xbf16> to vector<8x8xbf16>
    %c0_12 = arith.constant 0 : index
    %c1 = arith.constant 1 : index
    %c0_13 = arith.constant 0 : index
    %c0_14 = arith.constant 0 : index
    %16 = vector.load %arg7[%c0_12, %c1, %c0_13, %c0_14] : memref<1x4x8x8xbf16, #tpu.memory_space<vmem>>, vector<1x1x8x8xbf16>
    %17 = vector.shape_cast %16 : vector<1x1x8x8xbf16> to vector<8x8xbf16>
    %18 = vector.shape_cast %15 : vector<8x8xbf16> to vector<1x1x8x8xbf16>
    tpu.vector_store %arg7[%c0_12, %c1, %c0_13, %c0_14], %18 {strides = array<i32>} : memref<1x4x8x8xbf16, #tpu.memory_space<vmem>>, vector<1x1x8x8xbf16>,
    %19 = vector.extract_strided_slice %10 {offsets = [0, 16], sizes = [8, 8], strides = [1, 1]} : vector<8x32xbf16> to vector<8x8xbf16>
    %c0_15 = arith.constant 0 : index
    %c2 = arith.constant 2 : index
    %c0_16 = arith.constant 0 : index
    %c0_17 = arith.constant 0 : index
    %20 = vector.load %arg7[%c0_15, %c2, %c0_16, %c0_17] : memref<1x4x8x8xbf16, #tpu.memory_space<vmem>>, vector<1x1x8x8xbf16>
    %21 = vector.shape_cast %20 : vector<1x1x8x8xbf16> to vector<8x8xbf16>
    %22 = vector.shape_cast %19 : vector<8x8xbf16> to vector<1x1x8x8xbf16>
    tpu.vector_store %arg7[%c0_15, %c2, %c0_16, %c0_17], %22 {strides = array<i32>} : memref<1x4x8x8xbf16, #tpu.memory_space<vmem>>, vector<1x1x8x8xbf16>,
    %23 = vector.extract_strided_slice %10 {offsets = [0, 24], sizes = [8, 8], strides = [1, 1]} : vector<8x32xbf16> to vector<8x8xbf16>
    %c0_18 = arith.constant 0 : index
    %c3 = arith.constant 3 : index
    %c0_19 = arith.constant 0 : index
    %c0_20 = arith.constant 0 : index
    %24 = vector.load %arg7[%c0_18, %c3, %c0_19, %c0_20] : memref<1x4x8x8xbf16, #tpu.memory_space<vmem>>, vector<1x1x8x8xbf16>
    %25 = vector.shape_cast %24 : vector<1x1x8x8xbf16> to vector<8x8xbf16>
    %26 = vector.shape_cast %23 : vector<8x8xbf16> to vector<1x1x8x8xbf16>
    tpu.vector_store %arg7[%c0_18, %c3, %c0_19, %c0_20], %26 {strides = array<i32>} : memref<1x4x8x8xbf16, #tpu.memory_space<vmem>>, vector<1x1x8x8xbf16>,
    %c0_21 = arith.constant 0 : index
    %c0_22 = arith.constant 0 : index
    %c0_23 = arith.constant 0 : index
    %27 = vector.load %arg3[%c0_21, %c0_22, %c0_23] : memref<1x8x32xf32, #tpu.memory_space<vmem>>, vector<1x8x32xf32>
    %28 = vector.shape_cast %27 : vector<1x8x32xf32> to vector<8x32xf32>
    %29 = arith.truncf %28 : vector<8x32xf32> to vector<8x32xbf16>
    %c1_24 = arith.constant 1 : index
    %c0_25 = arith.constant 0 : index
    %c0_26 = arith.constant 0 : index
    %30 = vector.load %arg5[%c1_24, %c0_25, %c0_26] : memref<3x32x32xbf16, #tpu.memory_space<vmem>>, vector<1x32x32xbf16>
    %31 = vector.shape_cast %30 : vector<1x32x32xbf16> to vector<32x32xbf16>
    %cst_27 = arith.constant dense<0.000000e+00> : vector<8x32xf32>
    %32 = tpu.matmul %29, %31, %cst_27 {dimension_numbers = #tpu.dot_dimension_numbers<[1], [0], [0], [1], [0, 0, 1, 1], [], []>} : vector<8x32xbf16>, vector<32x32xbf16>, vector<8x32xf32> -> vector<8x32xf32>
    %c1_28 = arith.constant 1 : index
    %c0_29 = arith.constant 0 : index
    %c0_30 = arith.constant 0 : index
    %33 = vector.load %arg6[%c1_28, %c0_29, %c0_30] : memref<3x1x32xf32, #tpu.memory_space<vmem>>, vector<1x1x32xf32>
    %34 = vector.shape_cast %33 : vector<1x1x32xf32> to vector<1x32xf32>
    %35 = vector.broadcast %34 : vector<1x32xf32> to vector<8x32xf32>
    %36 = arith.addf %32, %35 : vector<8x32xf32>
    %37 = arith.truncf %36 : vector<8x32xf32> to vector<8x32xbf16>
    %38 = vector.extract_strided_slice %37 {offsets = [0, 0], sizes = [8, 8], strides = [1, 1]} : vector<8x32xbf16> to vector<8x8xbf16>
    %c0_31 = arith.constant 0 : index
    %c0_32 = arith.constant 0 : index
    %c0_33 = arith.constant 0 : index
    %c0_34 = arith.constant 0 : index
    %39 = vector.load %arg8[%c0_31, %c0_32, %c0_33, %c0_34] : memref<1x4x8x8xbf16, #tpu.memory_space<vmem>>, vector<1x1x8x8xbf16>
    %40 = vector.shape_cast %39 : vector<1x1x8x8xbf16> to vector<8x8xbf16>
    %41 = vector.shape_cast %38 : vector<8x8xbf16> to vector<1x1x8x8xbf16>
    tpu.vector_store %arg8[%c0_31, %c0_32, %c0_33, %c0_34], %41 {strides = array<i32>} : memref<1x4x8x8xbf16, #tpu.memory_space<vmem>>, vector<1x1x8x8xbf16>,
    %42 = vector.extract_strided_slice %37 {offsets = [0, 8], sizes = [8, 8], strides = [1, 1]} : vector<8x32xbf16> to vector<8x8xbf16>
    %c0_35 = arith.constant 0 : index
    %c1_36 = arith.constant 1 : index
    %c0_37 = arith.constant 0 : index
    %c0_38 = arith.constant 0 : index
    %43 = vector.load %arg8[%c0_35, %c1_36, %c0_37, %c0_38] : memref<1x4x8x8xbf16, #tpu.memory_space<vmem>>, vector<1x1x8x8xbf16>
    %44 = vector.shape_cast %43 : vector<1x1x8x8xbf16> to vector<8x8xbf16>
    %45 = vector.shape_cast %42 : vector<8x8xbf16> to vector<1x1x8x8xbf16>
    tpu.vector_store %arg8[%c0_35, %c1_36, %c0_37, %c0_38], %45 {strides = array<i32>} : memref<1x4x8x8xbf16, #tpu.memory_space<vmem>>, vector<1x1x8x8xbf16>,
    %46 = vector.extract_strided_slice %37 {offsets = [0, 16], sizes = [8, 8], strides = [1, 1]} : vector<8x32xbf16> to vector<8x8xbf16>
    %c0_39 = arith.constant 0 : index
    %c2_40 = arith.constant 2 : index
    %c0_41 = arith.constant 0 : index
    %c0_42 = arith.constant 0 : index
    %47 = vector.load %arg8[%c0_39, %c2_40, %c0_41, %c0_42] : memref<1x4x8x8xbf16, #tpu.memory_space<vmem>>, vector<1x1x8x8xbf16>
    %48 = vector.shape_cast %47 : vector<1x1x8x8xbf16> to vector<8x8xbf16>
    %49 = vector.shape_cast %46 : vector<8x8xbf16> to vector<1x1x8x8xbf16>
    tpu.vector_store %arg8[%c0_39, %c2_40, %c0_41, %c0_42], %49 {strides = array<i32>} : memref<1x4x8x8xbf16, #tpu.memory_space<vmem>>, vector<1x1x8x8xbf16>,
    %50 = vector.extract_strided_slice %37 {offsets = [0, 24], sizes = [8, 8], strides = [1, 1]} : vector<8x32xbf16> to vector<8x8xbf16>
    %c0_43 = arith.constant 0 : index
    %c3_44 = arith.constant 3 : index
    %c0_45 = arith.constant 0 : index
    %c0_46 = arith.constant 0 : index
    %51 = vector.load %arg8[%c0_43, %c3_44, %c0_45, %c0_46] : memref<1x4x8x8xbf16, #tpu.memory_space<vmem>>, vector<1x1x8x8xbf16>
    %52 = vector.shape_cast %51 : vector<1x1x8x8xbf16> to vector<8x8xbf16>
    %53 = vector.shape_cast %50 : vector<8x8xbf16> to vector<1x1x8x8xbf16>
    tpu.vector_store %arg8[%c0_43, %c3_44, %c0_45, %c0_46], %53 {strides = array<i32>} : memref<1x4x8x8xbf16, #tpu.memory_space<vmem>>, vector<1x1x8x8xbf16>,
    %c0_47 = arith.constant 0 : index
    %c0_48 = arith.constant 0 : index
    %c0_49 = arith.constant 0 : index
    %54 = vector.load %arg4[%c0_47, %c0_48, %c0_49] : memref<1x8x32xf32, #tpu.memory_space<vmem>>, vector<1x8x32xf32>
    %55 = vector.shape_cast %54 : vector<1x8x32xf32> to vector<8x32xf32>
    %56 = arith.truncf %55 : vector<8x32xf32> to vector<8x32xbf16>
    %c2_50 = arith.constant 2 : index
    %c0_51 = arith.constant 0 : index
    %c0_52 = arith.constant 0 : index
    %57 = vector.load %arg5[%c2_50, %c0_51, %c0_52] : memref<3x32x32xbf16, #tpu.memory_space<vmem>>, vector<1x32x32xbf16>
    %58 = vector.shape_cast %57 : vector<1x32x32xbf16> to vector<32x32xbf16>
    %cst_53 = arith.constant dense<0.000000e+00> : vector<8x32xf32>
    %59 = tpu.matmul %56, %58, %cst_53 {dimension_numbers = #tpu.dot_dimension_numbers<[1], [0], [0], [1], [0, 0, 1, 1], [], []>} : vector<8x32xbf16>, vector<32x32xbf16>, vector<8x32xf32> -> vector<8x32xf32>
    %c2_54 = arith.constant 2 : index
    %c0_55 = arith.constant 0 : index
    %c0_56 = arith.constant 0 : index
    %60 = vector.load %arg6[%c2_54, %c0_55, %c0_56] : memref<3x1x32xf32, #tpu.memory_space<vmem>>, vector<1x1x32xf32>
    %61 = vector.shape_cast %60 : vector<1x1x32xf32> to vector<1x32xf32>
    %62 = vector.broadcast %61 : vector<1x32xf32> to vector<8x32xf32>
    %63 = arith.addf %59, %62 : vector<8x32xf32>
    %64 = arith.truncf %63 : vector<8x32xf32> to vector<8x32xbf16>
    %65 = vector.extract_strided_slice %64 {offsets = [0, 0], sizes = [8, 8], strides = [1, 1]} : vector<8x32xbf16> to vector<8x8xbf16>
    %c0_57 = arith.constant 0 : index
    %c0_58 = arith.constant 0 : index
    %c0_59 = arith.constant 0 : index
    %c0_60 = arith.constant 0 : index
    %66 = vector.load %arg9[%c0_57, %c0_58, %c0_59, %c0_60] : memref<1x4x8x8xbf16, #tpu.memory_space<vmem>>, vector<1x1x8x8xbf16>
    %67 = vector.shape_cast %66 : vector<1x1x8x8xbf16> to vector<8x8xbf16>
    %68 = vector.shape_cast %65 : vector<8x8xbf16> to vector<1x1x8x8xbf16>
    tpu.vector_store %arg9[%c0_57, %c0_58, %c0_59, %c0_60], %68 {strides = array<i32>} : memref<1x4x8x8xbf16, #tpu.memory_space<vmem>>, vector<1x1x8x8xbf16>,
    %69 = vector.extract_strided_slice %64 {offsets = [0, 8], sizes = [8, 8], strides = [1, 1]} : vector<8x32xbf16> to vector<8x8xbf16>
    %c0_61 = arith.constant 0 : index
    %c1_62 = arith.constant 1 : index
    %c0_63 = arith.constant 0 : index
    %c0_64 = arith.constant 0 : index
    %70 = vector.load %arg9[%c0_61, %c1_62, %c0_63, %c0_64] : memref<1x4x8x8xbf16, #tpu.memory_space<vmem>>, vector<1x1x8x8xbf16>
    %71 = vector.shape_cast %70 : vector<1x1x8x8xbf16> to vector<8x8xbf16>
    %72 = vector.shape_cast %69 : vector<8x8xbf16> to vector<1x1x8x8xbf16>
    tpu.vector_store %arg9[%c0_61, %c1_62, %c0_63, %c0_64], %72 {strides = array<i32>} : memref<1x4x8x8xbf16, #tpu.memory_space<vmem>>, vector<1x1x8x8xbf16>,
    %73 = vector.extract_strided_slice %64 {offsets = [0, 16], sizes = [8, 8], strides = [1, 1]} : vector<8x32xbf16> to vector<8x8xbf16>
    %c0_65 = arith.constant 0 : index
    %c2_66 = arith.constant 2 : index
    %c0_67 = arith.constant 0 : index
    %c0_68 = arith.constant 0 : index
    %74 = vector.load %arg9[%c0_65, %c2_66, %c0_67, %c0_68] : memref<1x4x8x8xbf16, #tpu.memory_space<vmem>>, vector<1x1x8x8xbf16>
    %75 = vector.shape_cast %74 : vector<1x1x8x8xbf16> to vector<8x8xbf16>
    %76 = vector.shape_cast %73 : vector<8x8xbf16> to vector<1x1x8x8xbf16>
    tpu.vector_store %arg9[%c0_65, %c2_66, %c0_67, %c0_68], %76 {strides = array<i32>} : memref<1x4x8x8xbf16, #tpu.memory_space<vmem>>, vector<1x1x8x8xbf16>,
    %77 = vector.extract_strided_slice %64 {offsets = [0, 24], sizes = [8, 8], strides = [1, 1]} : vector<8x32xbf16> to vector<8x8xbf16>
    %c0_69 = arith.constant 0 : index
    %c3_70 = arith.constant 3 : index
    %c0_71 = arith.constant 0 : index
    %c0_72 = arith.constant 0 : index
    %78 = vector.load %arg9[%c0_69, %c3_70, %c0_71, %c0_72] : memref<1x4x8x8xbf16, #tpu.memory_space<vmem>>, vector<1x1x8x8xbf16>
    %79 = vector.shape_cast %78 : vector<1x1x8x8xbf16> to vector<8x8xbf16>
    %80 = vector.shape_cast %77 : vector<8x8xbf16> to vector<1x1x8x8xbf16>
    tpu.vector_store %arg9[%c0_69, %c3_70, %c0_71, %c0_72], %80 {strides = array<i32>} : memref<1x4x8x8xbf16, #tpu.memory_space<vmem>>, vector<1x1x8x8xbf16>,
    return
  }
  func.func @transform_0(%arg0: i32, %arg1: i32) -> (i32, i32, i32) {
    %c0_i32 = arith.constant 0 : i32
    %c0_i32_0 = arith.constant 0 : i32
    return %arg0, %arg1, %c0_i32 : i32, i32, i32
  }
  func.func @transform_1(%arg0: i32, %arg1: i32) -> (i32, i32, i32) {
    %c0_i32 = arith.constant 0 : i32
    %c0_i32_0 = arith.constant 0 : i32
    return %arg0, %arg1, %c0_i32 : i32, i32, i32
  }
  func.func @transform_2(%arg0: i32, %arg1: i32) -> (i32, i32, i32) {
    %c0_i32 = arith.constant 0 : i32
    %c0_i32_0 = arith.constant 0 : i32
    return %arg0, %arg1, %c0_i32 : i32, i32, i32
  }
  func.func @transform_3(%arg0: i32, %arg1: i32) -> (i32, i32, i32) {
    %c0_i32 = arith.constant 0 : i32
    %c0_i32_0 = arith.constant 0 : i32
    %c0_i32_1 = arith.constant 0 : i32
    %c0_i32_2 = arith.constant 0 : i32
    return %c0_i32, %c0_i32_0, %c0_i32_1 : i32, i32, i32
  }
  func.func @transform_4(%arg0: i32, %arg1: i32) -> (i32, i32, i32) {
    %c0_i32 = arith.constant 0 : i32
    %c0_i32_0 = arith.constant 0 : i32
    %c0_i32_1 = arith.constant 0 : i32
    %c0_i32_2 = arith.constant 0 : i32
    return %c0_i32, %c0_i32_0, %c0_i32_1 : i32, i32, i32
  }
  func.func @transform_5(%arg0: i32, %arg1: i32) -> (i32, i32, i32, i32) {
    %c0_i32 = arith.constant 0 : i32
    %c0_i32_0 = arith.constant 0 : i32
    %c0_i32_1 = arith.constant 0 : i32
    return %arg0, %c0_i32, %arg1, %c0_i32_0 : i32, i32, i32, i32
  }
  func.func @transform_6(%arg0: i32, %arg1: i32) -> (i32, i32, i32, i32) {
    %c0_i32 = arith.constant 0 : i32
    %c0_i32_0 = arith.constant 0 : i32
    %c0_i32_1 = arith.constant 0 : i32
    return %arg0, %c0_i32, %arg1, %c0_i32_0 : i32, i32, i32, i32
  }
  func.func @transform_7(%arg0: i32, %arg1: i32) -> (i32, i32, i32, i32) {
    %c0_i32 = arith.constant 0 : i32
    %c0_i32_0 = arith.constant 0 : i32
    %c0_i32_1 = arith.constant 0 : i32
    return %arg0, %c0_i32, %arg1, %c0_i32_0 : i32, i32, i32, i32
  }
}

module attributes {stable_mosaic.version = 11 : i64} {
  func.func @_attention_kernel(%arg0: i32, %arg1: i32, %arg2: i32, %arg3: memref<1x4x8x8xbf16, #tpu.memory_space<vmem>>, %arg4: memref<1x4x8x8xbf16, #tpu.memory_space<vmem>>, %arg5: memref<1x4x8x8xbf16, #tpu.memory_space<vmem>>, %arg6: memref<1x1x8xi32, #tpu.memory_space<vmem>>, %arg7: memref<4x8x32xbf16, #tpu.memory_space<vmem>>, %arg8: memref<1x32xf32, #tpu.memory_space<vmem>>, %arg9: memref<1x8x32xf32, #tpu.memory_space<vmem>>, %arg10: memref<4x8x1xf32, #tpu.memory_space<vmem>>, %arg11: memref<4x8x1xf32, #tpu.memory_space<vmem>>, %arg12: memref<4x8x8xf32, #tpu.memory_space<vmem>>) attributes {dimension_semantics = [#tpu.dimension_semantics<parallel>, #tpu.dimension_semantics<parallel>, #tpu.dimension_semantics<arbitrary>], iteration_bounds = array<i64: 2, 1, 1>, scalar_prefetch = 0 : i64, scratch_operands = 3 : i64, tpu.core_type = #tpu.core_type<tc>, window_params = [{transform_indices = @transform_0, window_bounds = array<i64: 1, 4, 8, 8>}, {transform_indices = @transform_1, window_bounds = array<i64: 1, 4, 8, 8>}, {transform_indices = @transform_2, window_bounds = array<i64: 1, 4, 8, 8>}, {transform_indices = @transform_3, window_bounds = array<i64: 1, 1, 8>}, {pipeline_mode = #tpu.pipeline_mode<synchronous>, transform_indices = @transform_4, window_bounds = array<i64: 4, 8, 32>}, {pipeline_mode = #tpu.pipeline_mode<synchronous>, transform_indices = @transform_5, window_bounds = array<i64: 1, 32>}, {transform_indices = @transform_6, window_bounds = array<i64: 1, 8, 32>}]} {
    %c0_i32 = arith.constant 0 : i32
    %0 = arith.cmpi eq, %arg2, %c0_i32 : i32
    %1 = arith.extui %0 : i1 to i32
    %c0_i32_0 = arith.constant 0 : i32
    %2 = arith.cmpi ne, %1, %c0_i32_0 : i32
    scf.if %2 {
      %cst_40 = arith.constant 0xFF800000 : f32
      %45 = vector.broadcast %cst_40 : f32 to vector<4x8x1xf32>
      %c0_41 = arith.constant 0 : index
      %c0_42 = arith.constant 0 : index
      %c0_43 = arith.constant 0 : index
      %46 = vector.load %arg10[%c0_41, %c0_42, %c0_43] : memref<4x8x1xf32, #tpu.memory_space<vmem>>, vector<4x8x1xf32>
      tpu.vector_store %arg10[%c0_41, %c0_42, %c0_43], %45 {strides = array<i32>} : memref<4x8x1xf32, #tpu.memory_space<vmem>>, vector<4x8x1xf32>,
      %cst_44 = arith.constant 0.000000e+00 : f32
      %47 = vector.broadcast %cst_44 : f32 to vector<4x8x1xf32>
      %c0_45 = arith.constant 0 : index
      %c0_46 = arith.constant 0 : index
      %c0_47 = arith.constant 0 : index
      %48 = vector.load %arg11[%c0_45, %c0_46, %c0_47] : memref<4x8x1xf32, #tpu.memory_space<vmem>>, vector<4x8x1xf32>
      tpu.vector_store %arg11[%c0_45, %c0_46, %c0_47], %47 {strides = array<i32>} : memref<4x8x1xf32, #tpu.memory_space<vmem>>, vector<4x8x1xf32>,
      %cst_48 = arith.constant 0.000000e+00 : f32
      %49 = vector.broadcast %cst_48 : f32 to vector<4x8x8xf32>
      %c0_49 = arith.constant 0 : index
      %c0_50 = arith.constant 0 : index
      %c0_51 = arith.constant 0 : index
      %50 = vector.load %arg12[%c0_49, %c0_50, %c0_51] : memref<4x8x8xf32, #tpu.memory_space<vmem>>, vector<4x8x8xf32>
      tpu.vector_store %arg12[%c0_49, %c0_50, %c0_51], %49 {strides = array<i32>} : memref<4x8x8xf32, #tpu.memory_space<vmem>>, vector<4x8x8xf32>,
    } else {
    }
    %c0 = arith.constant 0 : index
    %c0_1 = arith.constant 0 : index
    %c0_2 = arith.constant 0 : index
    %c0_3 = arith.constant 0 : index
    %3 = vector.load %arg3[%c0, %c0_1, %c0_2, %c0_3] : memref<1x4x8x8xbf16, #tpu.memory_space<vmem>>, vector<1x4x8x8xbf16>
    %4 = vector.shape_cast %3 : vector<1x4x8x8xbf16> to vector<4x8x8xbf16>
    %c0_4 = arith.constant 0 : index
    %c0_5 = arith.constant 0 : index
    %c0_6 = arith.constant 0 : index
    %c0_7 = arith.constant 0 : index
    %5 = vector.load %arg4[%c0_4, %c0_5, %c0_6, %c0_7] : memref<1x4x8x8xbf16, #tpu.memory_space<vmem>>, vector<1x4x8x8xbf16>
    %6 = vector.shape_cast %5 : vector<1x4x8x8xbf16> to vector<4x8x8xbf16>
    %c0_8 = arith.constant 0 : index
    %c0_9 = arith.constant 0 : index
    %c0_10 = arith.constant 0 : index
    %c0_11 = arith.constant 0 : index
    %7 = vector.load %arg5[%c0_8, %c0_9, %c0_10, %c0_11] : memref<1x4x8x8xbf16, #tpu.memory_space<vmem>>, vector<1x4x8x8xbf16>
    %8 = vector.shape_cast %7 : vector<1x4x8x8xbf16> to vector<4x8x8xbf16>
    "tpu.trace_start"() <{level = 10 : i32, message = "hqd,hkd->hqk"}> : () -> ()
    %cst = arith.constant dense<0.000000e+00> : vector<4x8x8xf32>
    %9 = tpu.matmul %4, %6, %cst {dimension_numbers = #tpu.dot_dimension_numbers<[2], [2], [1], [1], [0, 0, 0, 1, 1, 1], [0], [0]>} : vector<4x8x8xbf16>, vector<4x8x8xbf16>, vector<4x8x8xf32> -> vector<4x8x8xf32>
    "tpu.trace_stop"() : () -> ()
    %c0_12 = arith.constant 0 : index
    %c0_13 = arith.constant 0 : index
    %c0_14 = arith.constant 0 : index
    %10 = vector.load %arg6[%c0_12, %c0_13, %c0_14] : memref<1x1x8xi32, #tpu.memory_space<vmem>>, vector<1x1x8xi32>
    %11 = vector.shape_cast %10 : vector<1x1x8xi32> to vector<1x8xi32>
    %12 = vector.shape_cast %11 : vector<1x8xi32> to vector<1x1x8xi32>
    %c0_i32_15 = arith.constant 0 : i32
    %13 = vector.broadcast %c0_i32_15 : i32 to vector<1x1x8xi32>
    %14 = arith.cmpi sgt, %12, %13 : vector<1x1x8xi32>
    %cst_16 = arith.constant -1.000000e+30 : f32
    %15 = vector.shape_cast %14 : vector<1x1x8xi1> to vector<1x1x8xi1>
    %16 = vector.broadcast %15 : vector<1x1x8xi1> to vector<4x8x8xi1>
    %17 = vector.broadcast %cst_16 : f32 to vector<4x8x8xf32>
    %18 = arith.select %16, %9, %17 : vector<4x8x8xi1>, vector<4x8x8xf32>
    %c0_17 = arith.constant 0 : index
    %c0_18 = arith.constant 0 : index
    %c0_19 = arith.constant 0 : index
    %19 = vector.load %arg10[%c0_17, %c0_18, %c0_19] : memref<4x8x1xf32, #tpu.memory_space<vmem>>, vector<4x8x1xf32>
    %cst_20 = arith.constant dense<0xFF800000> : vector<4x8xf32>
    %20 = vector.multi_reduction <maximumf>, %18, %cst_20 [2] : vector<4x8x8xf32> to vector<4x8xf32>
    %21 = vector.shape_cast %20 : vector<4x8xf32> to vector<4x8x1xf32>
    %22 = arith.maximumf %19, %21 : vector<4x8x1xf32>
    %23 = arith.subf %19, %22 : vector<4x8x1xf32>
    %24 = math.exp %23 : vector<4x8x1xf32>
    %25 = vector.broadcast %22 : vector<4x8x1xf32> to vector<4x8x8xf32>
    %26 = arith.subf %18, %25 : vector<4x8x8xf32>
    %27 = math.exp %26 : vector<4x8x8xf32>
    %c0_21 = arith.constant 0 : index
    %c0_22 = arith.constant 0 : index
    %c0_23 = arith.constant 0 : index
    %28 = vector.load %arg11[%c0_21, %c0_22, %c0_23] : memref<4x8x1xf32, #tpu.memory_space<vmem>>, vector<4x8x1xf32>
    %29 = arith.mulf %24, %28 : vector<4x8x1xf32>
    %cst_24 = arith.constant dense<0.000000e+00> : vector<4x8xf32>
    %30 = vector.multi_reduction <add>, %27, %cst_24 [2] : vector<4x8x8xf32> to vector<4x8xf32>
    %31 = vector.shape_cast %30 : vector<4x8xf32> to vector<4x8x1xf32>
    %32 = arith.addf %29, %31 : vector<4x8x1xf32>
    %c0_25 = arith.constant 0 : index
    %c0_26 = arith.constant 0 : index
    %c0_27 = arith.constant 0 : index
    %33 = vector.load %arg11[%c0_25, %c0_26, %c0_27] : memref<4x8x1xf32, #tpu.memory_space<vmem>>, vector<4x8x1xf32>
    tpu.vector_store %arg11[%c0_25, %c0_26, %c0_27], %32 {strides = array<i32>} : memref<4x8x1xf32, #tpu.memory_space<vmem>>, vector<4x8x1xf32>,
    %c0_28 = arith.constant 0 : index
    %c0_29 = arith.constant 0 : index
    %c0_30 = arith.constant 0 : index
    %34 = vector.load %arg12[%c0_28, %c0_29, %c0_30] : memref<4x8x8xf32, #tpu.memory_space<vmem>>, vector<4x8x8xf32>
    %35 = vector.broadcast %24 : vector<4x8x1xf32> to vector<4x8x8xf32>
    %36 = arith.mulf %35, %34 : vector<4x8x8xf32>
    %37 = arith.truncf %27 : vector<4x8x8xf32> to vector<4x8x8xbf16>
    "tpu.trace_start"() <{level = 10 : i32, message = "hqk,hkd->hqd"}> : () -> ()
    %cst_31 = arith.constant dense<0.000000e+00> : vector<4x8x8xf32>
    %38 = tpu.matmul %37, %8, %cst_31 {dimension_numbers = #tpu.dot_dimension_numbers<[2], [1], [1], [2], [0, 0, 0, 1, 1, 2], [0], [0]>} : vector<4x8x8xbf16>, vector<4x8x8xbf16>, vector<4x8x8xf32> -> vector<4x8x8xf32>
    "tpu.trace_stop"() : () -> ()
    %39 = arith.addf %36, %38 : vector<4x8x8xf32>
    %c0_32 = arith.constant 0 : index
    %c0_33 = arith.constant 0 : index
    %c0_34 = arith.constant 0 : index
    %40 = vector.load %arg12[%c0_32, %c0_33, %c0_34] : memref<4x8x8xf32, #tpu.memory_space<vmem>>, vector<4x8x8xf32>
    tpu.vector_store %arg12[%c0_32, %c0_33, %c0_34], %39 {strides = array<i32>} : memref<4x8x8xf32, #tpu.memory_space<vmem>>, vector<4x8x8xf32>,
    %c0_35 = arith.constant 0 : index
    %c0_36 = arith.constant 0 : index
    %c0_37 = arith.constant 0 : index
    %41 = vector.load %arg10[%c0_35, %c0_36, %c0_37] : memref<4x8x1xf32, #tpu.memory_space<vmem>>, vector<4x8x1xf32>
    tpu.vector_store %arg10[%c0_35, %c0_36, %c0_37], %22 {strides = array<i32>} : memref<4x8x1xf32, #tpu.memory_space<vmem>>, vector<4x8x1xf32>,
    %c0_i32_38 = arith.constant 0 : i32
    %42 = arith.cmpi eq, %arg2, %c0_i32_38 : i32
    %43 = arith.extui %42 : i1 to i32
    %c0_i32_39 = arith.constant 0 : i32
    %44 = arith.cmpi ne, %43, %c0_i32_39 : i32
    scf.if %44 {
      %c0_40 = arith.constant 0 : index
      %c0_41 = arith.constant 0 : index
      %c0_42 = arith.constant 0 : index
      %45 = vector.load %arg11[%c0_40, %c0_41, %c0_42] : memref<4x8x1xf32, #tpu.memory_space<vmem>>, vector<4x8x1xf32>
      %46 = tpu.reciprocal %45 {approx = true} : vector<4x8x1xf32> -> vector<4x8x1xf32>
      %c0_43 = arith.constant 0 : index
      %c0_44 = arith.constant 0 : index
      %c0_45 = arith.constant 0 : index
      %47 = vector.load %arg12[%c0_43, %c0_44, %c0_45] : memref<4x8x8xf32, #tpu.memory_space<vmem>>, vector<4x8x8xf32>
      %48 = vector.broadcast %46 : vector<4x8x1xf32> to vector<4x8x8xf32>
      %49 = arith.mulf %47, %48 : vector<4x8x8xf32>
      %50 = arith.truncf %49 : vector<4x8x8xf32> to vector<4x8x8xbf16>
      %c0_46 = arith.constant 0 : index
      %c0_47 = arith.constant 0 : index
      %c0_48 = arith.constant 0 : index
      %51 = vector.load %arg7[%c0_46, %c0_47, %c0_48] : memref<4x8x32xbf16, #tpu.memory_space<vmem>>, vector<4x8x32xbf16>
      %52 = vector.extract_strided_slice %50 {offsets = [0, 0, 0], sizes = [1, 8, 8], strides = [1, 1, 1]} : vector<4x8x8xbf16> to vector<1x8x8xbf16>
      %53 = vector.shape_cast %52 : vector<1x8x8xbf16> to vector<8x8xbf16>
      %54 = vector.extract_strided_slice %51 {offsets = [0, 0, 0], sizes = [1, 8, 32], strides = [1, 1, 1]} : vector<4x8x32xbf16> to vector<1x8x32xbf16>
      %55 = vector.shape_cast %54 : vector<1x8x32xbf16> to vector<8x32xbf16>
      %cst_49 = arith.constant dense<0.000000e+00> : vector<8x32xf32>
      %56 = tpu.matmul %53, %55, %cst_49 {dimension_numbers = #tpu.dot_dimension_numbers<[1], [0], [0], [1], [0, 0, 1, 1], [], []>} : vector<8x8xbf16>, vector<8x32xbf16>, vector<8x32xf32> -> vector<8x32xf32>
      %57 = vector.extract_strided_slice %50 {offsets = [1, 0, 0], sizes = [1, 8, 8], strides = [1, 1, 1]} : vector<4x8x8xbf16> to vector<1x8x8xbf16>
      %58 = vector.shape_cast %57 : vector<1x8x8xbf16> to vector<8x8xbf16>
      %59 = vector.extract_strided_slice %51 {offsets = [1, 0, 0], sizes = [1, 8, 32], strides = [1, 1, 1]} : vector<4x8x32xbf16> to vector<1x8x32xbf16>
      %60 = vector.shape_cast %59 : vector<1x8x32xbf16> to vector<8x32xbf16>
      %cst_50 = arith.constant dense<0.000000e+00> : vector<8x32xf32>
      %61 = tpu.matmul %58, %60, %cst_50 {dimension_numbers = #tpu.dot_dimension_numbers<[1], [0], [0], [1], [0, 0, 1, 1], [], []>} : vector<8x8xbf16>, vector<8x32xbf16>, vector<8x32xf32> -> vector<8x32xf32>
      %62 = arith.addf %56, %61 : vector<8x32xf32>
      %63 = vector.extract_strided_slice %50 {offsets = [2, 0, 0], sizes = [1, 8, 8], strides = [1, 1, 1]} : vector<4x8x8xbf16> to vector<1x8x8xbf16>
      %64 = vector.shape_cast %63 : vector<1x8x8xbf16> to vector<8x8xbf16>
      %65 = vector.extract_strided_slice %51 {offsets = [2, 0, 0], sizes = [1, 8, 32], strides = [1, 1, 1]} : vector<4x8x32xbf16> to vector<1x8x32xbf16>
      %66 = vector.shape_cast %65 : vector<1x8x32xbf16> to vector<8x32xbf16>
      %cst_51 = arith.constant dense<0.000000e+00> : vector<8x32xf32>
      %67 = tpu.matmul %64, %66, %cst_51 {dimension_numbers = #tpu.dot_dimension_numbers<[1], [0], [0], [1], [0, 0, 1, 1], [], []>} : vector<8x8xbf16>, vector<8x32xbf16>, vector<8x32xf32> -> vector<8x32xf32>
      %68 = arith.addf %62, %67 : vector<8x32xf32>
      %69 = vector.extract_strided_slice %50 {offsets = [3, 0, 0], sizes = [1, 8, 8], strides = [1, 1, 1]} : vector<4x8x8xbf16> to vector<1x8x8xbf16>
      %70 = vector.shape_cast %69 : vector<1x8x8xbf16> to vector<8x8xbf16>
      %71 = vector.extract_strided_slice %51 {offsets = [3, 0, 0], sizes = [1, 8, 32], strides = [1, 1, 1]} : vector<4x8x32xbf16> to vector<1x8x32xbf16>
      %72 = vector.shape_cast %71 : vector<1x8x32xbf16> to vector<8x32xbf16>
      %cst_52 = arith.constant dense<0.000000e+00> : vector<8x32xf32>
      %73 = tpu.matmul %70, %72, %cst_52 {dimension_numbers = #tpu.dot_dimension_numbers<[1], [0], [0], [1], [0, 0, 1, 1], [], []>} : vector<8x8xbf16>, vector<8x32xbf16>, vector<8x32xf32> -> vector<8x32xf32>
      %74 = arith.addf %68, %73 : vector<8x32xf32>
      %c0_53 = arith.constant 0 : index
      %c0_54 = arith.constant 0 : index
      %75 = vector.load %arg8[%c0_53, %c0_54] : memref<1x32xf32, #tpu.memory_space<vmem>>, vector<1x32xf32>
      %76 = vector.broadcast %75 : vector<1x32xf32> to vector<8x32xf32>
      %77 = arith.addf %74, %76 : vector<8x32xf32>
      %c0_55 = arith.constant 0 : index
      %c0_56 = arith.constant 0 : index
      %c0_57 = arith.constant 0 : index
      %78 = vector.load %arg9[%c0_55, %c0_56, %c0_57] : memref<1x8x32xf32, #tpu.memory_space<vmem>>, vector<1x8x32xf32>
      %79 = vector.shape_cast %78 : vector<1x8x32xf32> to vector<8x32xf32>
      %80 = vector.shape_cast %77 : vector<8x32xf32> to vector<1x8x32xf32>
      tpu.vector_store %arg9[%c0_55, %c0_56, %c0_57], %80 {strides = array<i32>} : memref<1x8x32xf32, #tpu.memory_space<vmem>>, vector<1x8x32xf32>,
    } else {
    }
    return
  }
  func.func @transform_0(%arg0: i32, %arg1: i32, %arg2: i32) -> (i32, i32, i32, i32) {
    %c0_i32 = arith.constant 0 : i32
    %c0_i32_0 = arith.constant 0 : i32
    %c0_i32_1 = arith.constant 0 : i32
    return %arg0, %c0_i32, %arg1, %c0_i32_0 : i32, i32, i32, i32
  }
  func.func @transform_1(%arg0: i32, %arg1: i32, %arg2: i32) -> (i32, i32, i32, i32) {
    %c0_i32 = arith.constant 0 : i32
    %c0_i32_0 = arith.constant 0 : i32
    %c0_i32_1 = arith.constant 0 : i32
    return %arg0, %c0_i32, %arg2, %c0_i32_0 : i32, i32, i32, i32
  }
  func.func @transform_2(%arg0: i32, %arg1: i32, %arg2: i32) -> (i32, i32, i32, i32) {
    %c0_i32 = arith.constant 0 : i32
    %c0_i32_0 = arith.constant 0 : i32
    %c0_i32_1 = arith.constant 0 : i32
    return %arg0, %c0_i32, %arg2, %c0_i32_0 : i32, i32, i32, i32
  }
  func.func @transform_3(%arg0: i32, %arg1: i32, %arg2: i32) -> (i32, i32, i32) {
    %c0_i32 = arith.constant 0 : i32
    %c0_i32_0 = arith.constant 0 : i32
    return %arg0, %c0_i32, %arg2 : i32, i32, i32
  }
  func.func @transform_4(%arg0: i32, %arg1: i32, %arg2: i32) -> (i32, i32, i32) {
    %c0_i32 = arith.constant 0 : i32
    %c0_i32_0 = arith.constant 0 : i32
    %c0_i32_1 = arith.constant 0 : i32
    %c0_i32_2 = arith.constant 0 : i32
    return %c0_i32, %c0_i32_0, %c0_i32_1 : i32, i32, i32
  }
  func.func @transform_5(%arg0: i32, %arg1: i32, %arg2: i32) -> (i32, i32) {
    %c0_i32 = arith.constant 0 : i32
    %c0_i32_0 = arith.constant 0 : i32
    %c0_i32_1 = arith.constant 0 : i32
    return %c0_i32, %c0_i32_0 : i32, i32
  }
  func.func @transform_6(%arg0: i32, %arg1: i32, %arg2: i32) -> (i32, i32, i32) {
    %c0_i32 = arith.constant 0 : i32
    %c0_i32_0 = arith.constant 0 : i32
    return %arg0, %arg1, %c0_i32 : i32, i32, i32
  }
}

</mosaic_0001>

<llo_original>
// kernel: multi_head_attention.2
$region0: #{multi_head_attention.2}
  #allocation0 [shape = 'u32[]', space=smem, size = 0x4, offset = 0x4, fixed_abs, tag = 'smem constant byte address 0x4 - core index']
  #allocation1 [shape = 'u32[144,128]{1,0:T(1,128)}', space=vmem, size = 0x12000, scoped, tag = 'internal scratch']
  %s0 = inlined_call_operand.vmem [shape: f32[2,8,32], index: 0, kind: input, shape index: {}]
  %s1 = inlined_call_operand.vmem [shape: f32[2,8,32], index: 1, kind: input, shape index: {}]
  %s2 = inlined_call_operand.vmem [shape: f32[2,8,32], index: 2, kind: input, shape index: {}]
  %s3 = inlined_call_operand.vmem [shape: bf16[3,32,32], index: 3, kind: input, shape index: {}]
  %s4 = inlined_call_operand.vmem [shape: f32[3,1,32], index: 4, kind: input, shape index: {}]
  %s5 = inlined_call_operand.vmem [shape: bf16[2,4,8,8], index: 5, kind: output, shape index: {0}]
  %s6 = inlined_call_operand.vmem [shape: bf16[2,4,8,8], index: 6, kind: output, shape index: {1}]
  %s7 = inlined_call_operand.vmem [shape: bf16[2,4,8,8], index: 7, kind: output, shape index: {2}]
  %8 = xla_tuple %s5, %s6, %s7
  %s9 = sld [smem:[#allocation0]]
  $region69: #{multi_head_attention.2} parent=0
    _
  %s11 = ssub.s32 1, %s9
  %s12 = scalar_select 0, %s11, %s9
  loop: start=0, step=1, limit=4
  $region2: #{multi_head_attention.2} parent=0 // loop_pre_header
    _
  $region3: #{multi_head_attention.2} parent=0 // loop_header
    %s14 = sphi 0, %s18
    %p15 = scmp.ge.s32.totalorder %s14, 4
    %s21 = sphi 0, %s33
    %s22 = sphi 0, %s29
    %s23 = sphi 0, %s21
    %s24 = sphi 0, %s22
    %s25 = sphi 0, %s23
    %s26 = sphi 0, %s24
    %s38 = sphi 0, %s40
    %s41 = sphi 0, %s38
    %s42 = sphi 0, %s41
    %s58 = sphi 0, %s42
    %s66 = sphi 0, %s68
    %s69 = sphi 0, %s66
    %s70 = sphi 0, %s69
    %s86 = sphi 0, %s70
    %s94 = sphi 0, %s96
    %s97 = sphi 0, %s94
    %s98 = sphi 0, %s97
    %s114 = sphi 0, %s98
    %s118 = sphi 0, %s118
    %s120 = sphi 0, %s118
    %s121 = sphi 0, %s120
    %s135 = sphi 0, %s121
    %s139 = sphi 0, %s139
    %s141 = sphi 0, %s139
    %s142 = sphi 0, %s141
    %s156 = sphi 0, %s142
    %s164 = sphi 0, %s166
    %s167 = sphi 0, %s164
    %s168 = sphi 0, %s167
    %s184 = sphi 0, %s168
    %s192 = sphi 0, %s194
    %s195 = sphi 0, %s192
    %s196 = sphi 0, %s195
    %s212 = sphi 0, %s196
    %s220 = sphi 0, %s222
    %s223 = sphi 0, %s220
    %s224 = sphi 0, %s223
    %s240 = sphi 0, %s224
  $region4: #{multi_head_attention.2} parent=0 // loop_header_branch
    %17 = sbr.rel (%p15) target = $region8
  $region5: #{multi_head_attention.2} parent=0 // loop_body
    %s19 = ssub.s32 %s14, 1
    %s20 = ssub.s32 %s14, 2
    %s27 = sadd.s32 1, %s22
    %p28 = scmp.ge.s32.totalorder %s27, 1
    %s29 = scalar_select %p28, 0, %s27
    %s30 = sadd.s32 1, %s21
    %s31 = scalar_select %p28, %s30, %s21
    %p32 = scmp.ge.s32.totalorder %s31, 2
    %s33 = scalar_select %p32, 0, %s31
    %s34 = ssub.s32 %s21, %s33
    %s35 = ssub.s32 %s22, %s29
    %s36 = sor.u32 %s34, %s35
    %p37 = scmp.eq.s32.totalorder %s36, 0
    %s39 = sadd.s32 %s38, 1
    %s40 = scalar_select %p37, %s38, %s39
    %p43 = pneg %p37
    %p44 = scmp.eq.s32.totalorder %s14, 1
    %p45 = por %p43, %p44
    %p46 = scmp.ne.s32.totalorder %s38, %s41
    %p47 = scmp.eq.s32.totalorder %s14, 0
    %p48 = por %p46, %p47
    %p49 = scmp.ne.s32.totalorder %s38, %s41
    %p50 = scmp.eq.s32.totalorder %s19, 1
    %p51 = por %p49, %p50
    %p52 = scmp.ne.s32.totalorder %s41, %s42
    %p53 = scmp.eq.s32.totalorder %s19, 0
    %p54 = por %p52, %p53
    %p55 = scmp.ne.s32.totalorder %s41, %s42
    %p56 = scmp.eq.s32.totalorder %s20, 1
    %p57 = por %p55, %p56
    %p59 = scmp.ne.s32.totalorder %s42, %s58
    %p60 = scmp.eq.s32.totalorder %s20, 0
    %p61 = por %p59, %p60
    %s62 = ssub.s32 %s21, %s33
    %s63 = ssub.s32 %s22, %s29
    %s64 = sor.u32 %s62, %s63
    %p65 = scmp.eq.s32.totalorder %s64, 0
    %s67 = sadd.s32 %s66, 1
    %s68 = scalar_select %p65, %s66, %s67
    %p71 = pneg %p65
    %p72 = scmp.eq.s32.totalorder %s14, 1
    %p73 = por %p71, %p72
    %p74 = scmp.ne.s32.totalorder %s66, %s69
    %p75 = scmp.eq.s32.totalorder %s14, 0
    %p76 = por %p74, %p75
    %p77 = scmp.ne.s32.totalorder %s66, %s69
    %p78 = scmp.eq.s32.totalorder %s19, 1
    %p79 = por %p77, %p78
    %p80 = scmp.ne.s32.totalorder %s69, %s70
    %p81 = scmp.eq.s32.totalorder %s19, 0
    %p82 = por %p80, %p81
    %p83 = scmp.ne.s32.totalorder %s69, %s70
    %p84 = scmp.eq.s32.totalorder %s20, 1
    %p85 = por %p83, %p84
    %p87 = scmp.ne.s32.totalorder %s70, %s86
    %p88 = scmp.eq.s32.totalorder %s20, 0
    %p89 = por %p87, %p88
    %s90 = ssub.s32 %s21, %s33
    %s91 = ssub.s32 %s22, %s29
    %s92 = sor.u32 %s90, %s91
    %p93 = scmp.eq.s32.totalorder %s92, 0
    %s95 = sadd.s32 %s94, 1
    %s96 = scalar_select %p93, %s94, %s95
    %p99 = pneg %p93
    %p100 = scmp.eq.s32.totalorder %s14, 1
    %p101 = por %p99, %p100
    %p102 = scmp.ne.s32.totalorder %s94, %s97
    %p103 = scmp.eq.s32.totalorder %s14, 0
    %p104 = por %p102, %p103
    %p105 = scmp.ne.s32.totalorder %s94, %s97
    %p106 = scmp.eq.s32.totalorder %s19, 1
    %p107 = por %p105, %p106
    %p108 = scmp.ne.s32.totalorder %s97, %s98
    %p109 = scmp.eq.s32.totalorder %s19, 0
    %p110 = por %p108, %p109
    %p111 = scmp.ne.s32.totalorder %s97, %s98
    %p112 = scmp.eq.s32.totalorder %s20, 1
    %p113 = por %p111, %p112
    %p115 = scmp.ne.s32.totalorder %s98, %s114
    %p116 = scmp.eq.s32.totalorder %s20, 0
    %p117 = por %p115, %p116
    %s119 = sadd.s32 %s118, 1
    %p122 = scmp.eq.s32.totalorder %s14, 1
    %p123 = scmp.ne.s32.totalorder %s118, %s120
    %p124 = scmp.eq.s32.totalorder %s14, 0
    %p125 = por %p123, %p124
    %p126 = scmp.ne.s32.totalorder %s118, %s120
    %p127 = scmp.eq.s32.totalorder %s19, 1
    %p128 = por %p126, %p127
    %p129 = scmp.ne.s32.totalorder %s120, %s121
    %p130 = scmp.eq.s32.totalorder %s19, 0
    %p131 = por %p129, %p130
    %p132 = scmp.ne.s32.totalorder %s120, %s121
    %p133 = scmp.eq.s32.totalorder %s20, 1
    %p134 = por %p132, %p133
    %p136 = scmp.ne.s32.totalorder %s121, %s135
    %p137 = scmp.eq.s32.totalorder %s20, 0
    %p138 = por %p136, %p137
    %s140 = sadd.s32 %s139, 1
    %p143 = scmp.eq.s32.totalorder %s14, 1
    %p144 = scmp.ne.s32.totalorder %s139, %s141
    %p145 = scmp.eq.s32.totalorder %s14, 0
    %p146 = por %p144, %p145
    %p147 = scmp.ne.s32.totalorder %s139, %s141
    %p148 = scmp.eq.s32.totalorder %s19, 1
    %p149 = por %p147, %p148
    %p150 = scmp.ne.s32.totalorder %s141, %s142
    %p151 = scmp.eq.s32.totalorder %s19, 0
    %p152 = por %p150, %p151
    %p153 = scmp.ne.s32.totalorder %s141, %s142
    %p154 = scmp.eq.s32.totalorder %s20, 1
    %p155 = por %p153, %p154
    %p157 = scmp.ne.s32.totalorder %s142, %s156
    %p158 = scmp.eq.s32.totalorder %s20, 0
    %p159 = por %p157, %p158
    %s160 = ssub.s32 %s21, %s33
    %s161 = ssub.s32 %s22, %s29
    %s162 = sor.u32 %s160, %s161
    %p163 = scmp.eq.s32.totalorder %s162, 0
    %s165 = sadd.s32 %s164, 1
    %s166 = scalar_select %p163, %s164, %s165
    %p169 = pneg %p163
    %p170 = scmp.eq.s32.totalorder %s14, 1
    %p171 = por %p169, %p170
    %p172 = scmp.ne.s32.totalorder %s164, %s167
    %p173 = scmp.eq.s32.totalorder %s14, 0
    %p174 = por %p172, %p173
    %p175 = scmp.ne.s32.totalorder %s164, %s167
    %p176 = scmp.eq.s32.totalorder %s19, 1
    %p177 = por %p175, %p176
    %p178 = scmp.ne.s32.totalorder %s167, %s168
    %p179 = scmp.eq.s32.totalorder %s19, 0
    %p180 = por %p178, %p179
    %p181 = scmp.ne.s32.totalorder %s167, %s168
    %p182 = scmp.eq.s32.totalorder %s20, 1
    %p183 = por %p181, %p182
    %p185 = scmp.ne.s32.totalorder %s168, %s184
    %p186 = scmp.eq.s32.totalorder %s20, 0
    %p187 = por %p185, %p186
    %s188 = ssub.s32 %s21, %s33
    %s189 = ssub.s32 %s22, %s29
    %s190 = sor.u32 %s188, %s189
    %p191 = scmp.eq.s32.totalorder %s190, 0
    %s193 = sadd.s32 %s192, 1
    %s194 = scalar_select %p191, %s192, %s193
    %p197 = pneg %p191
    %p198 = scmp.eq.s32.totalorder %s14, 1
    %p199 = por %p197, %p198
    %p200 = scmp.ne.s32.totalorder %s192, %s195
    %p201 = scmp.eq.s32.totalorder %s14, 0
    %p202 = por %p200, %p201
    %p203 = scmp.ne.s32.totalorder %s192, %s195
    %p204 = scmp.eq.s32.totalorder %s19, 1
    %p205 = por %p203, %p204
    %p206 = scmp.ne.s32.totalorder %s195, %s196
    %p207 = scmp.eq.s32.totalorder %s19, 0
    %p208 = por %p206, %p207
    %p209 = scmp.ne.s32.totalorder %s195, %s196
    %p210 = scmp.eq.s32.totalorder %s20, 1
    %p211 = por %p209, %p210
    %p213 = scmp.ne.s32.totalorder %s196, %s212
    %p214 = scmp.eq.s32.totalorder %s20, 0
    %p215 = por %p213, %p214
    %s216 = ssub.s32 %s21, %s33
    %s217 = ssub.s32 %s22, %s29
    %s218 = sor.u32 %s216, %s217
    %p219 = scmp.eq.s32.totalorder %s218, 0
    %s221 = sadd.s32 %s220, 1
    %s222 = scalar_select %p219, %s220, %s221
    %p225 = pneg %p219
    %p226 = scmp.eq.s32.totalorder %s14, 1
    %p227 = por %p225, %p226
    %p228 = scmp.ne.s32.totalorder %s220, %s223
    %p229 = scmp.eq.s32.totalorder %s14, 0
    %p230 = por %p228, %p229
    %p231 = scmp.ne.s32.totalorder %s220, %s223
    %p232 = scmp.eq.s32.totalorder %s19, 1
    %p233 = por %p231, %p232
    %p234 = scmp.ne.s32.totalorder %s223, %s224
    %p235 = scmp.eq.s32.totalorder %s19, 0
    %p236 = por %p234, %p235
    %p237 = scmp.ne.s32.totalorder %s223, %s224
    %p238 = scmp.eq.s32.totalorder %s20, 1
    %p239 = por %p237, %p238
    %p241 = scmp.ne.s32.totalorder %s224, %s240
    %p242 = scmp.eq.s32.totalorder %s20, 0
    %p243 = por %p241, %p242
    %p244 = scmp.le.s32.totalorder 1, %s14
    %p245 = scmp.lt.s32.totalorder %s14, 3
    %p246 = pnand %p244, %p245
    %p247 = pneg %p246
    // Predicated region
    $region9: #{multi_head_attention.2} parent=5 // pred_check
      _
    $region10: #{multi_head_attention.2} parent=5 // pred_check_branch
      %249 = sbr.rel (%p246) target = $region12
    $region11: #{multi_head_attention.2} parent=5 // pred_region
      %s250 = ssub.s32 %s14, 1
      // Predicated region
      $region13: #{multi_head_attention.2} parent=11 // pred_check
        %p251 = pneg %p131
      $region14: #{multi_head_attention.2} parent=11 // pred_check_branch
        %253 = sbr.rel (%p251) target = $region16
      $region15: #{multi_head_attention.2} parent=11 // pred_region
        _
      $region16: #{multi_head_attention.2} parent=11 // pred_fallthru
        _
      // Predicated region
      $region17: #{multi_head_attention.2} parent=11 // pred_check
        %p254 = pneg %p152
      $region18: #{multi_head_attention.2} parent=11 // pred_check_branch
        %256 = sbr.rel (%p254) target = $region20
      $region19: #{multi_head_attention.2} parent=11 // pred_region
        _
      $region20: #{multi_head_attention.2} parent=11 // pred_fallthru
        _
    $region12: #{multi_head_attention.2} parent=5 // pred_fallthru
      _
    %p257 = scmp.lt.s32.totalorder %s14, 2
    // Predicated region
    $region21: #{multi_head_attention.2} parent=5 // pred_check
      %p258 = pneg %p257
    $region22: #{multi_head_attention.2} parent=5 // pred_check_branch
      %260 = sbr.rel (%p258) target = $region24
    $region23: #{multi_head_attention.2} parent=5 // pred_region
      // Predicated region
      $region25: #{multi_head_attention.2} parent=23 // pred_check
        %p261 = pneg %p48
      $region26: #{multi_head_attention.2} parent=23 // pred_check_branch
        %263 = sbr.rel (%p261) target = $region28
      $region27: #{multi_head_attention.2} parent=23 // pred_region
        %p264 = scmp.lt.s32.totalorder %s21, 1
        %s265 = scalar_select %p264, %s21, 1
        %p266 = scmp.lt.s32.totalorder %s22, 0
        %s267 = scalar_select %p266, %s22, 0
        %s268 = sadd.s32 %s267, %s265
        %s269 = smul.addr %s268, 8
        %s270 = scalar_lea.vmem %s0, %s269
      $region28: #{multi_head_attention.2} parent=23 // pred_fallthru
        _
      // Predicated region
      $region29: #{multi_head_attention.2} parent=23 // pred_check
        %p271 = pneg %p76
      $region30: #{multi_head_attention.2} parent=23 // pred_check_branch
        %273 = sbr.rel (%p271) target = $region32
      $region31: #{multi_head_attention.2} parent=23 // pred_region
        %p274 = scmp.lt.s32.totalorder %s21, 1
        %s275 = scalar_select %p274, %s21, 1
        %p276 = scmp.lt.s32.totalorder %s22, 0
        %s277 = scalar_select %p276, %s22, 0
        %s278 = sadd.s32 %s277, %s275
        %s279 = smul.addr %s278, 8
        %s280 = scalar_lea.vmem %s1, %s279
      $region32: #{multi_head_attention.2} parent=23 // pred_fallthru
        _
      // Predicated region
      $region33: #{multi_head_attention.2} parent=23 // pred_check
        %p281 = pneg %p104
      $region34: #{multi_head_attention.2} parent=23 // pred_check_branch
        %283 = sbr.rel (%p281) target = $region36
      $region35: #{multi_head_attention.2} parent=23 // pred_region
        %p284 = scmp.lt.s32.totalorder %s21, 1
        %s285 = scalar_select %p284, %s21, 1
        %p286 = scmp.lt.s32.totalorder %s22, 0
        %s287 = scalar_select %p286, %s22, 0
        %s288 = sadd.s32 %s287, %s285
        %s289 = smul.addr %s288, 8
        %s290 = scalar_lea.vmem %s2, %s289
      $region36: #{multi_head_attention.2} parent=23 // pred_fallthru
        _
    $region24: #{multi_head_attention.2} parent=5 // pred_fallthru
      _
    %p291 = scmp.le.s32.totalorder 1, %s14
    %p292 = scmp.lt.s32.totalorder %s14, 3
    %p293 = pnand %p291, %p292
    %p294 = pneg %p293
    // Predicated region
    $region37: #{multi_head_attention.2} parent=5 // pred_check
      _
    $region38: #{multi_head_attention.2} parent=5 // pred_check_branch
      %296 = sbr.rel (%p293) target = $region40
    $region39: #{multi_head_attention.2} parent=5 // pred_region
      %s297 = ssub.s32 %s14, 1
      %p298 = scmp.lt.s32.totalorder %s23, 1
      %s299 = scalar_select %p298, %s23, 1
      %p300 = scmp.lt.s32.totalorder %s24, 0
      %s301 = scalar_select %p300, %s24, 0
      %s302 = sadd.s32 %s301, %s299
      %s303 = smul.addr %s302, 8
      %s304 = scalar_lea.vmem %s0, %s303
      %p305 = pneg %p54
      %p306 = pneg %p51
      %p307 = scmp.lt.s32.totalorder %s23, 1
      %s308 = scalar_select %p307, %s23, 1
      %p309 = scmp.lt.s32.totalorder %s24, 0
      %s310 = scalar_select %p309, %s24, 0
      %s311 = sadd.s32 %s310, %s308
      %s312 = smul.addr %s311, 8
      %s313 = scalar_lea.vmem %s1, %s312
      %p314 = pneg %p82
      %p315 = pneg %p79
      %p316 = scmp.lt.s32.totalorder %s23, 1
      %s317 = scalar_select %p316, %s23, 1
      %p318 = scmp.lt.s32.totalorder %s24, 0
      %s319 = scalar_select %p318, %s24, 0
      %s320 = sadd.s32 %s319, %s317
      %s321 = smul.addr %s320, 8
      %s322 = scalar_lea.vmem %s2, %s321
      %p323 = pneg %p110
      %p324 = pneg %p107
      %p325 = pneg %p131
      %p326 = pneg %p128
      %p327 = pneg %p152
      %p328 = pneg %p149
      %p329 = pneg %p180
      %p330 = pneg %p177
      %p331 = scmp.lt.s32.totalorder %s23, 1
      %s332 = scalar_select %p331, %s23, 1
      %p333 = scmp.lt.s32.totalorder %s24, 0
      %s334 = scalar_select %p333, %s24, 0
      %s335 = smul.addr %s332, 4
      %s336 = sadd.s32 %s334, %s335
      %s337 = smul.addr %s336, 4
      %s338 = scalar_lea.vmem %s5, %s337
      %p339 = pneg %p208
      %p340 = pneg %p205
      %p341 = scmp.lt.s32.totalorder %s23, 1
      %s342 = scalar_select %p341, %s23, 1
      %p343 = scmp.lt.s32.totalorder %s24, 0
      %s344 = scalar_select %p343, %s24, 0
      %s345 = smul.addr %s342, 4
      %s346 = sadd.s32 %s344, %s345
      %s347 = smul.addr %s346, 4
      %s348 = scalar_lea.vmem %s6, %s347
      %p349 = pneg %p236
      %p350 = pneg %p233
      %p351 = scmp.lt.s32.totalorder %s23, 1
      %s352 = scalar_select %p351, %s23, 1
      %p353 = scmp.lt.s32.totalorder %s24, 0
      %s354 = scalar_select %p353, %s24, 0
      %s355 = smul.addr %s352, 4
      %s356 = sadd.s32 %s354, %s355
      %s357 = smul.addr %s356, 4
      %s358 = scalar_lea.vmem %s7, %s357
      %p359 = scmp.lt.s32.totalorder %s23, 1
      %s360 = scalar_select %p359, %s23, 1
      %p361 = scmp.lt.s32.totalorder %s24, 0
      %s362 = scalar_select %p361, %s24, 0
      %s363 = sadd.s32 %s362, %s360
      %s364 = smul.addr %s363, 8
      %s365 = scalar_lea.vmem %s0, %s364
      %p366 = scmp.lt.s32.totalorder %s23, 1
      %s367 = scalar_select %p366, %s23, 1
      %p368 = scmp.lt.s32.totalorder %s24, 0
      %s369 = scalar_select %p368, %s24, 0
      %s370 = sadd.s32 %s369, %s367
      %s371 = smul.addr %s370, 8
      %s372 = scalar_lea.vmem %s1, %s371
      %p373 = scmp.lt.s32.totalorder %s23, 1
      %s374 = scalar_select %p373, %s23, 1
      %p375 = scmp.lt.s32.totalorder %s24, 0
      %s376 = scalar_select %p375, %s24, 0
      %s377 = sadd.s32 %s376, %s374
      %s378 = smul.addr %s377, 8
      %s379 = scalar_lea.vmem %s2, %s378
      %p380 = scmp.lt.s32.totalorder %s23, 1
      %s381 = scalar_select %p380, %s23, 1
      %p382 = scmp.lt.s32.totalorder %s24, 0
      %s383 = scalar_select %p382, %s24, 0
      %s384 = smul.addr %s381, 4
      %s385 = sadd.s32 %s383, %s384
      %s386 = smul.addr %s385, 4
      %s387 = scalar_lea.vmem %s5, %s386
      %p388 = scmp.lt.s32.totalorder %s23, 1
      %s389 = scalar_select %p388, %s23, 1
      %p390 = scmp.lt.s32.totalorder %s24, 0
      %s391 = scalar_select %p390, %s24, 0
      %s392 = smul.addr %s389, 4
      %s393 = sadd.s32 %s391, %s392
      %s394 = smul.addr %s393, 4
      %s395 = scalar_lea.vmem %s6, %s394
      %p396 = scmp.lt.s32.totalorder %s23, 1
      %s397 = scalar_select %p396, %s23, 1
      %p398 = scmp.lt.s32.totalorder %s24, 0
      %s399 = scalar_select %p398, %s24, 0
      %s400 = smul.addr %s397, 4
      %s401 = sadd.s32 %s399, %s400
      %s402 = smul.addr %s401, 4
      %s403 = scalar_lea.vmem %s7, %s402
      %v405 = vld [vmem:[%s365] sm:$0xff]
      %v406 = vpack.c.bf16 %v405, %v405
      %v407 = vld [vmem:[%s3] sm:$0xf]
      %v408 = vld [vmem:[%s3 + $0x4] sm:$0xf]
      %v409 = vld [vmem:[%s3 + $0x8] sm:$0xf]
      %v410 = vld [vmem:[%s3 + $0xc] sm:$0xf]
      %v411 = vld [vmem:[%s4] sm:$0x1]
      %v413 = vlaneseq
      %v414 = vshrl.u32 %v413, 7
      %v415 = vsub.s32 0, %v414
      %v416 = vrot.slane %v411, %v415
      %v422 = vunpack.c.l.b16 %v407
      %v423 = vunpack.c.l.b16 %v408
      %v424 = vunpack.c.l.b16 %v409
      %v425 = vunpack.c.l.b16 %v410
      %v426 = vpack.c.b16 %v423, %v422
      %v427 = vpack.c.b16 %v425, %v424
      %vm430 = vcmask 261120
      %v432 = vsel %vm430, %v406, 0
      %434 = vmatprep.subr.bf16.mxu0 0
      %435 = vmatpush1.bf16.msra.mxu0 0
      %436 = vmatprep.subr.bf16.mxu0 0
      %437 = vmatpush1.bf16.msra.mxu0 0
      %438 = vmatprep.subr.bf16.mxu0 0
      %439 = vmatpush1.bf16.msra.mxu0 0
      %440 = vmatprep.subr.bf16.mxu0 0
      %441 = vmatpush1.bf16.msra.mxu0 0
      %442 = vmatprep.subr.bf16.mxu0 0
      %443 = vmatpush1.bf16.msra.mxu0 0
      %444 = vmatprep.subr.bf16.mxu0 0
      %445 = vmatpush1.bf16.msra.mxu0 0
      %446 = vmatprep.subr.bf16.mxu0 0
      %447 = vmatpush1.bf16.msra.mxu0 %v427
      %448 = vmatprep.subr.bf16.mxu0 0
      %449 = vmatpush1.bf16.msra.mxu0 %v426
      %450 = vmatprep.subr.bf16.mxu0 0
      %451 = vmatpush2.bf16.msra.mxu0 0
      %452 = vmatprep.subr.bf16.mxu0 0
      %453 = vmatpush2.bf16.msra.mxu0 0
      %454 = vmatprep.subr.bf16.mxu0 0
      %455 = vmatpush2.bf16.msra.mxu0 0
      %456 = vmatprep.subr.bf16.mxu0 0
      %457 = vmatpush2.bf16.msra.mxu0 0
      %458 = vmatprep.subr.bf16.mxu0 0
      %459 = vmatpush2.bf16.msra.mxu0 0
      %460 = vmatprep.subr.bf16.mxu0 0
      %461 = vmatpush2.bf16.msra.mxu0 0
      %462 = vmatprep.subr.bf16.mxu0 0
      %463 = vmatpush2.bf16.msra.mxu0 0
      %464 = vmatprep.subr.bf16.mxu0 0
      %465 = vmatpush2.bf16.msra.mxu0 0
      %466 = vmatprep.mubr.bf16.mxu0 0
      %467 = vmatmul.mubr.bf16.gmra.mxu0 %v432
      %v468 = vpop.f32.mrf.mxu0
      %v469 = vadd.f32 %v416, %v468
      %v470 = vpop.f32.mrf.mxu0
      %v471 = vpop.f32.mrf.mxu0
      %v472 = vpop.f32.mrf.mxu0
      %473 = vdwg.mxu0
      %v474 = vpack.c.bf16 %v469, %v469
      %vm475 = vcmask 60416
      %476 = vst.msk [vmem:[%s387] sm:$0xf] %vm475, %v474
      %v478 = vunpack.c.l.b16 %v474
      %v479 = vpack.c.b16 %v478, %v478
      %480 = vrot.lane.b32.xlu0 %v479, 120
      %v481 = vpop.permute.xlu0 %480
      %s483 = scalar_lea.vmem %s387, 4
      %484 = vst.msk [vmem:[%s483] sm:$0xf] %vm475, %v481
      %485 = vrot.lane.b32.xlu0 %v479, 112
      %v486 = vpop.permute.xlu0 %485
      %s488 = scalar_lea.vmem %s387, 8
      %489 = vst.msk [vmem:[%s488] sm:$0xf] %vm475, %v486
      %490 = vrot.lane.b32.xlu0 %v479, 104
      %v491 = vpop.permute.xlu0 %490
      %s493 = scalar_lea.vmem %s387, 12
      %494 = vst.msk [vmem:[%s493] sm:$0xf] %vm475, %v491
      %v495 = vld [vmem:[%s372] sm:$0xff]
      %v496 = vpack.c.bf16 %v495, %v495
      %s497 = scalar_lea.vmem %s3, 16
      %v498 = vld [vmem:[%s497] sm:$0xf]
      %v499 = vld [vmem:[%s497 + $0x4] sm:$0xf]
      %v500 = vld [vmem:[%s497 + $0x8] sm:$0xf]
      %v501 = vld [vmem:[%s497 + $0xc] sm:$0xf]
      %s502 = scalar_lea.vmem %s4, 1
      %v503 = vld [vmem:[%s502] sm:$0x1]
      %v505 = vlaneseq
      %v506 = vshrl.u32 %v505, 7
      %v507 = vsub.s32 0, %v506
      %v508 = vrot.slane %v503, %v507
      %v514 = vunpack.c.l.b16 %v498
      %v515 = vunpack.c.l.b16 %v499
      %v516 = vunpack.c.l.b16 %v500
      %v517 = vunpack.c.l.b16 %v501
      %v518 = vpack.c.b16 %v515, %v514
      %v519 = vpack.c.b16 %v517, %v516
      %v523 = vsel %vm430, %v496, 0
      %525 = vmatprep.subr.bf16.mxu0 0
      %526 = vmatpush1.bf16.msra.mxu0 0
      %527 = vmatprep.subr.bf16.mxu0 0
      %528 = vmatpush1.bf16.msra.mxu0 0
      %529 = vmatprep.subr.bf16.mxu0 0
      %530 = vmatpush1.bf16.msra.mxu0 0
      %531 = vmatprep.subr.bf16.mxu0 0
      %532 = vmatpush1.bf16.msra.mxu0 0
      %533 = vmatprep.subr.bf16.mxu0 0
      %534 = vmatpush1.bf16.msra.mxu0 0
      %535 = vmatprep.subr.bf16.mxu0 0
      %536 = vmatpush1.bf16.msra.mxu0 0
      %537 = vmatprep.subr.bf16.mxu0 0
      %538 = vmatpush1.bf16.msra.mxu0 %v519
      %539 = vmatprep.subr.bf16.mxu0 0
      %540 = vmatpush1.bf16.msra.mxu0 %v518
      %541 = vmatprep.subr.bf16.mxu0 0
      %542 = vmatpush2.bf16.msra.mxu0 0
      %543 = vmatprep.subr.bf16.mxu0 0
      %544 = vmatpush2.bf16.msra.mxu0 0
      %545 = vmatprep.subr.bf16.mxu0 0
      %546 = vmatpush2.bf16.msra.mxu0 0
      %547 = vmatprep.subr.bf16.mxu0 0
      %548 = vmatpush2.bf16.msra.mxu0 0
      %549 = vmatprep.subr.bf16.mxu0 0
      %550 = vmatpush2.bf16.msra.mxu0 0
      %551 = vmatprep.subr.bf16.mxu0 0
      %552 = vmatpush2.bf16.msra.mxu0 0
      %553 = vmatprep.subr.bf16.mxu0 0
      %554 = vmatpush2.bf16.msra.mxu0 0
      %555 = vmatprep.subr.bf16.mxu0 0
      %556 = vmatpush2.bf16.msra.mxu0 0
      %557 = vmatprep.mubr.bf16.mxu0 0
      %558 = vmatmul.mubr.bf16.gmra.mxu0 %v523
      %v559 = vpop.f32.mrf.mxu0
      %v560 = vadd.f32 %v508, %v559
      %v561 = vpop.f32.mrf.mxu0
      %v562 = vpop.f32.mrf.mxu0
      %v563 = vpop.f32.mrf.mxu0
      %564 = vdwg.mxu0
      %v565 = vpack.c.bf16 %v560, %v560
      %566 = vst.msk [vmem:[%s395] sm:$0xf] %vm475, %v565
      %v568 = vunpack.c.l.b16 %v565
      %v569 = vpack.c.b16 %v568, %v568
      %570 = vrot.lane.b32.xlu0 %v569, 120
      %v571 = vpop.permute.xlu0 %570
      %s573 = scalar_lea.vmem %s395, 4
      %574 = vst.msk [vmem:[%s573] sm:$0xf] %vm475, %v571
      %575 = vrot.lane.b32.xlu0 %v569, 112
      %v576 = vpop.permute.xlu0 %575
      %s578 = scalar_lea.vmem %s395, 8
      %579 = vst.msk [vmem:[%s578] sm:$0xf] %vm475, %v576
      %580 = vrot.lane.b32.xlu0 %v569, 104
      %v581 = vpop.permute.xlu0 %580
      %s583 = scalar_lea.vmem %s395, 12
      %584 = vst.msk [vmem:[%s583] sm:$0xf] %vm475, %v581
      %v585 = vld [vmem:[%s379] sm:$0xff]
      %v586 = vpack.c.bf16 %v585, %v585
      %s587 = scalar_lea.vmem %s3, 32
      %v588 = vld [vmem:[%s587] sm:$0xf]
      %v589 = vld [vmem:[%s587 + $0x4] sm:$0xf]
      %v590 = vld [vmem:[%s587 + $0x8] sm:$0xf]
      %v591 = vld [vmem:[%s587 + $0xc] sm:$0xf]
      %s592 = scalar_lea.vmem %s4, 2
      %v593 = vld [vmem:[%s592] sm:$0x1]
      %v595 = vlaneseq
      %v596 = vshrl.u32 %v595, 7
      %v597 = vsub.s32 0, %v596
      %v598 = vrot.slane %v593, %v597
      %v604 = vunpack.c.l.b16 %v588
      %v605 = vunpack.c.l.b16 %v589
      %v606 = vunpack.c.l.b16 %v590
      %v607 = vunpack.c.l.b16 %v591
      %v608 = vpack.c.b16 %v605, %v604
      %v609 = vpack.c.b16 %v607, %v606
      %v613 = vsel %vm430, %v586, 0
      %615 = vmatprep.subr.bf16.mxu0 0
      %616 = vmatpush1.bf16.msra.mxu0 0
      %617 = vmatprep.subr.bf16.mxu0 0
      %618 = vmatpush1.bf16.msra.mxu0 0
      %619 = vmatprep.subr.bf16.mxu0 0
      %620 = vmatpush1.bf16.msra.mxu0 0
      %621 = vmatprep.subr.bf16.mxu0 0
      %622 = vmatpush1.bf16.msra.mxu0 0
      %623 = vmatprep.subr.bf16.mxu0 0
      %624 = vmatpush1.bf16.msra.mxu0 0
      %625 = vmatprep.subr.bf16.mxu0 0
      %626 = vmatpush1.bf16.msra.mxu0 0
      %627 = vmatprep.subr.bf16.mxu0 0
      %628 = vmatpush1.bf16.msra.mxu0 %v609
      %629 = vmatprep.subr.bf16.mxu0 0
      %630 = vmatpush1.bf16.msra.mxu0 %v608
      %631 = vmatprep.subr.bf16.mxu0 0
      %632 = vmatpush2.bf16.msra.mxu0 0
      %633 = vmatprep.subr.bf16.mxu0 0
      %634 = vmatpush2.bf16.msra.mxu0 0
      %635 = vmatprep.subr.bf16.mxu0 0
      %636 = vmatpush2.bf16.msra.mxu0 0
      %637 = vmatprep.subr.bf16.mxu0 0
      %638 = vmatpush2.bf16.msra.mxu0 0
      %639 = vmatprep.subr.bf16.mxu0 0
      %640 = vmatpush2.bf16.msra.mxu0 0
      %641 = vmatprep.subr.bf16.mxu0 0
      %642 = vmatpush2.bf16.msra.mxu0 0
      %643 = vmatprep.subr.bf16.mxu0 0
      %644 = vmatpush2.bf16.msra.mxu0 0
      %645 = vmatprep.subr.bf16.mxu0 0
      %646 = vmatpush2.bf16.msra.mxu0 0
      %647 = vmatprep.mubr.bf16.mxu0 0
      %648 = vmatmul.mubr.bf16.gmra.mxu0 %v613
      %v649 = vpop.f32.mrf.mxu0
      %v650 = vadd.f32 %v598, %v649
      %v651 = vpop.f32.mrf.mxu0
      %v652 = vpop.f32.mrf.mxu0
      %v653 = vpop.f32.mrf.mxu0
      %654 = vdwg.mxu0
      %v655 = vpack.c.bf16 %v650, %v650
      %656 = vst.msk [vmem:[%s403] sm:$0xf] %vm475, %v655
      %v658 = vunpack.c.l.b16 %v655
      %v659 = vpack.c.b16 %v658, %v658
      %660 = vrot.lane.b32.xlu0 %v659, 120
      %v661 = vpop.permute.xlu0 %660
      %s663 = scalar_lea.vmem %s403, 4
      %664 = vst.msk [vmem:[%s663] sm:$0xf] %vm475, %v661
      %665 = vrot.lane.b32.xlu0 %v659, 112
      %v666 = vpop.permute.xlu0 %665
      %s668 = scalar_lea.vmem %s403, 8
      %669 = vst.msk [vmem:[%s668] sm:$0xf] %vm475, %v666
      %670 = vrot.lane.b32.xlu0 %v659, 104
      %v671 = vpop.permute.xlu0 %670
      %s673 = scalar_lea.vmem %s403, 12
      %674 = vst.msk [vmem:[%s673] sm:$0xf] %vm475, %v671
      %p675 = scmp.lt.s32.totalorder %s23, 1
      %s676 = scalar_select %p675, %s23, 1
      %p677 = scmp.lt.s32.totalorder %s24, 0
      %s678 = scalar_select %p677, %s24, 0
      %s679 = smul.addr %s676, 4
      %s680 = sadd.s32 %s678, %s679
      %s681 = smul.addr %s680, 4
      %s682 = scalar_lea.vmem %s5, %s681
      %p683 = scmp.lt.s32.totalorder %s23, 1
      %s684 = scalar_select %p683, %s23, 1
      %p685 = scmp.lt.s32.totalorder %s24, 0
      %s686 = scalar_select %p685, %s24, 0
      %s687 = smul.addr %s684, 4
      %s688 = sadd.s32 %s686, %s687
      %s689 = smul.addr %s688, 4
      %s690 = scalar_lea.vmem %s6, %s689
      %p691 = scmp.lt.s32.totalorder %s23, 1
      %s692 = scalar_select %p691, %s23, 1
      %p693 = scmp.lt.s32.totalorder %s24, 0
      %s694 = scalar_select %p693, %s24, 0
      %s695 = smul.addr %s692, 4
      %s696 = sadd.s32 %s694, %s695
      %s697 = smul.addr %s696, 4
      %s698 = scalar_lea.vmem %s7, %s697
      // Predicated region
      $region41: #{multi_head_attention.2} parent=39 // pred_check
        %p699 = pneg %p177
      $region42: #{multi_head_attention.2} parent=39 // pred_check_branch
        %701 = sbr.rel (%p699) target = $region44
      $region43: #{multi_head_attention.2} parent=39 // pred_region
        _
      $region44: #{multi_head_attention.2} parent=39 // pred_fallthru
        _
      // Predicated region
      $region45: #{multi_head_attention.2} parent=39 // pred_check
        %p702 = pneg %p205
      $region46: #{multi_head_attention.2} parent=39 // pred_check_branch
        %704 = sbr.rel (%p702) target = $region48
      $region47: #{multi_head_attention.2} parent=39 // pred_region
        _
      $region48: #{multi_head_attention.2} parent=39 // pred_fallthru
        _
      // Predicated region
      $region49: #{multi_head_attention.2} parent=39 // pred_check
        %p705 = pneg %p233
      $region50: #{multi_head_attention.2} parent=39 // pred_check_branch
        %707 = sbr.rel (%p705) target = $region52
      $region51: #{multi_head_attention.2} parent=39 // pred_region
        _
      $region52: #{multi_head_attention.2} parent=39 // pred_fallthru
        _
    $region40: #{multi_head_attention.2} parent=5 // pred_fallthru
      _
    %p708 = scmp.le.s32.totalorder 2, %s14
    // Predicated region
    $region53: #{multi_head_attention.2} parent=5 // pred_check
      %p709 = pneg %p708
    $region54: #{multi_head_attention.2} parent=5 // pred_check_branch
      %711 = sbr.rel (%p709) target = $region56
    $region55: #{multi_head_attention.2} parent=5 // pred_region
      %s712 = ssub.s32 %s14, 2
      // Predicated region
      $region57: #{multi_head_attention.2} parent=55 // pred_check
        %p713 = pneg %p183
      $region58: #{multi_head_attention.2} parent=55 // pred_check_branch
        %715 = sbr.rel (%p713) target = $region60
      $region59: #{multi_head_attention.2} parent=55 // pred_region
        %p716 = scmp.lt.s32.totalorder %s25, 1
        %s717 = scalar_select %p716, %s25, 1
        %p718 = scmp.lt.s32.totalorder %s26, 0
        %s719 = scalar_select %p718, %s26, 0
        %s720 = smul.addr %s717, 4
        %s721 = sadd.s32 %s719, %s720
        %s722 = smul.addr %s721, 4
        %s723 = scalar_lea.vmem %s5, %s722
      $region60: #{multi_head_attention.2} parent=55 // pred_fallthru
        _
      // Predicated region
      $region61: #{multi_head_attention.2} parent=55 // pred_check
        %p724 = pneg %p211
      $region62: #{multi_head_attention.2} parent=55 // pred_check_branch
        %726 = sbr.rel (%p724) target = $region64
      $region63: #{multi_head_attention.2} parent=55 // pred_region
        %p727 = scmp.lt.s32.totalorder %s25, 1
        %s728 = scalar_select %p727, %s25, 1
        %p729 = scmp.lt.s32.totalorder %s26, 0
        %s730 = scalar_select %p729, %s26, 0
        %s731 = smul.addr %s728, 4
        %s732 = sadd.s32 %s730, %s731
        %s733 = smul.addr %s732, 4
        %s734 = scalar_lea.vmem %s6, %s733
      $region64: #{multi_head_attention.2} parent=55 // pred_fallthru
        _
      // Predicated region
      $region65: #{multi_head_attention.2} parent=55 // pred_check
        %p735 = pneg %p239
      $region66: #{multi_head_attention.2} parent=55 // pred_check_branch
        %737 = sbr.rel (%p735) target = $region68
      $region67: #{multi_head_attention.2} parent=55 // pred_region
        %p738 = scmp.lt.s32.totalorder %s25, 1
        %s739 = scalar_select %p738, %s25, 1
        %p740 = scmp.lt.s32.totalorder %s26, 0
        %s741 = scalar_select %p740, %s26, 0
        %s742 = smul.addr %s739, 4
        %s743 = sadd.s32 %s741, %s742
        %s744 = smul.addr %s743, 4
        %s745 = scalar_lea.vmem %s7, %s744
      $region68: #{multi_head_attention.2} parent=55 // pred_fallthru
        _
    $region56: #{multi_head_attention.2} parent=5 // pred_fallthru
      _
  $region6: #{multi_head_attention.2} parent=0 // loop_footer
    %s18 = sadd.s32 1, %s14
  $region7: #{multi_head_attention.2} parent=0 // loop_footer_branch
    %13 = sbr.rel target = $region3
  $region8: #{multi_head_attention.2} parent=0 // loop_exit
    _

// kernel: multi_head_attention.3
$region0: #{multi_head_attention.3}
  #allocation0 [shape = 'u32[]', space=smem, size = 0x4, offset = 0x4, fixed_abs, tag = 'smem constant byte address 0x4 - core index']
  #allocation1 [shape = 'u32[144,128]{1,0:T(1,128)}', space=vmem, size = 0x12000, scoped, tag = 'internal scratch']
  #allocation2 [shape = 'f32[4,8,1]{2,1,0:T(8,128)}', space=vmem, size = 0x4000, scoped, tag = 'scratch operand']
  #allocation3 [shape = 'f32[4,8,1]{2,1,0:T(8,128)}', space=vmem, size = 0x4000, scoped, tag = 'scratch operand']
  #allocation4 [shape = 'f32[4,8,8]{2,1,0:T(8,128)}', space=vmem, size = 0x4000, scoped, tag = 'scratch operand']
  %s0 = inlined_call_operand.vmem [shape: bf16[2,4,8,8], index: 0, kind: input, shape index: {}]
  %s1 = inlined_call_operand.vmem [shape: bf16[2,4,8,8], index: 1, kind: input, shape index: {}]
  %s2 = inlined_call_operand.vmem [shape: bf16[2,4,8,8], index: 2, kind: input, shape index: {}]
  %s3 = inlined_call_operand.vmem [shape: s32[2,1,8], index: 3, kind: input, shape index: {}]
  %s4 = inlined_call_operand.vmem [shape: bf16[4,8,32], index: 4, kind: input, shape index: {}]
  %s5 = inlined_call_operand.vmem [shape: f32[1,32], index: 5, kind: input, shape index: {}]
  %s6 = inlined_call_operand.hbm [shape: f32[2,8,32], index: 6, kind: output, shape index: {}]
  %s7 = sld [smem:[#allocation0]]
  $region65: #{multi_head_attention.3} parent=0
    _
  %s9 = ssub.s32 1, %s7
  %s10 = scalar_select 0, %s9, %s7
  $region1: #{multi_head_attention.3} parent=0
    #allocation5 [shape = 'u8[8192]{0}', space=vmem, size = 0x2000, scoped, tag = 'output window, operand 0']
    #allocation6 [shape = 's32[2]{0}', space=sflag, size = 0x8, scoped, tag = 'scoped memory for multi_head_attention.3']
    %11 = vsyncpa [#allocation6], 0
    %s12 = scalar_lea.sflag [#allocation6], 1
    %13 = vsyncpa %s12, 0
    loop: start=0, step=1, limit=4
    $region2: #{multi_head_attention.3} parent=1 // loop_pre_header
      _
    $region3: #{multi_head_attention.3} parent=1 // loop_header
      %s15 = sphi 0, %s19
      %p16 = scmp.ge.s32.totalorder %s15, 4
      %s22 = sphi 0, %s41
      %s23 = sphi 0, %s37
      %s24 = sphi 0, %s33
      %s25 = sphi 0, %s22
      %s26 = sphi 0, %s23
      %s27 = sphi 0, %s24
      %s28 = sphi 0, %s25
      %s29 = sphi 0, %s26
      %s30 = sphi 0, %s27
      %s46 = sphi 0, %s48
      %s49 = sphi 0, %s46
      %s50 = sphi 0, %s49
      %s66 = sphi 0, %s50
      %s74 = sphi 0, %s76
      %s77 = sphi 0, %s74
      %s78 = sphi 0, %s77
      %s94 = sphi 0, %s78
      %s102 = sphi 0, %s104
      %s105 = sphi 0, %s102
      %s106 = sphi 0, %s105
      %s122 = sphi 0, %s106
      %s130 = sphi 0, %s132
      %s133 = sphi 0, %s130
      %s134 = sphi 0, %s133
      %s150 = sphi 0, %s134
      %s154 = sphi 0, %s154
      %s156 = sphi 0, %s154
      %s157 = sphi 0, %s156
      %s171 = sphi 0, %s157
      %s175 = sphi 0, %s175
      %s177 = sphi 0, %s175
      %s178 = sphi 0, %s177
      %s192 = sphi 0, %s178
      %s200 = sphi 0, %s202
      %s203 = sphi 0, %s200
      %s204 = sphi 0, %s203
      %s220 = sphi 0, %s204
    $region4: #{multi_head_attention.3} parent=1 // loop_header_branch
      %18 = sbr.rel (%p16) target = $region8
    $region5: #{multi_head_attention.3} parent=1 // loop_body
      %s20 = ssub.s32 %s15, 1
      %s21 = ssub.s32 %s15, 2
      %s31 = sadd.s32 1, %s24
      %p32 = scmp.ge.s32.totalorder %s31, 1
      %s33 = scalar_select %p32, 0, %s31
      %s34 = sadd.s32 1, %s23
      %s35 = scalar_select %p32, %s34, %s23
      %p36 = scmp.ge.s32.totalorder %s35, 1
      %s37 = scalar_select %p36, 0, %s35
      %s38 = sadd.s32 1, %s22
      %s39 = scalar_select %p36, %s38, %s22
      %p40 = scmp.ge.s32.totalorder %s39, 2
      %s41 = scalar_select %p40, 0, %s39
      %s42 = ssub.s32 %s22, %s41
      %s43 = ssub.s32 %s23, %s37
      %s44 = sor.u32 %s42, %s43
      %p45 = scmp.eq.s32.totalorder %s44, 0
      %s47 = sadd.s32 %s46, 1
      %s48 = scalar_select %p45, %s46, %s47
      %p51 = pneg %p45
      %p52 = scmp.eq.s32.totalorder %s15, 1
      %p53 = por %p51, %p52
      %p54 = scmp.ne.s32.totalorder %s46, %s49
      %p55 = scmp.eq.s32.totalorder %s15, 0
      %p56 = por %p54, %p55
      %p57 = scmp.ne.s32.totalorder %s46, %s49
      %p58 = scmp.eq.s32.totalorder %s20, 1
      %p59 = por %p57, %p58
      %p60 = scmp.ne.s32.totalorder %s49, %s50
      %p61 = scmp.eq.s32.totalorder %s20, 0
      %p62 = por %p60, %p61
      %p63 = scmp.ne.s32.totalorder %s49, %s50
      %p64 = scmp.eq.s32.totalorder %s21, 1
      %p65 = por %p63, %p64
      %p67 = scmp.ne.s32.totalorder %s50, %s66
      %p68 = scmp.eq.s32.totalorder %s21, 0
      %p69 = por %p67, %p68
      %s70 = ssub.s32 %s22, %s41
      %s71 = ssub.s32 %s24, %s33
      %s72 = sor.u32 %s70, %s71
      %p73 = scmp.eq.s32.totalorder %s72, 0
      %s75 = sadd.s32 %s74, 1
      %s76 = scalar_select %p73, %s74, %s75
      %p79 = pneg %p73
      %p80 = scmp.eq.s32.totalorder %s15, 1
      %p81 = por %p79, %p80
      %p82 = scmp.ne.s32.totalorder %s74, %s77
      %p83 = scmp.eq.s32.totalorder %s15, 0
      %p84 = por %p82, %p83
      %p85 = scmp.ne.s32.totalorder %s74, %s77
      %p86 = scmp.eq.s32.totalorder %s20, 1
      %p87 = por %p85, %p86
      %p88 = scmp.ne.s32.totalorder %s77, %s78
      %p89 = scmp.eq.s32.totalorder %s20, 0
      %p90 = por %p88, %p89
      %p91 = scmp.ne.s32.totalorder %s77, %s78
      %p92 = scmp.eq.s32.totalorder %s21, 1
      %p93 = por %p91, %p92
      %p95 = scmp.ne.s32.totalorder %s78, %s94
      %p96 = scmp.eq.s32.totalorder %s21, 0
      %p97 = por %p95, %p96
      %s98 = ssub.s32 %s22, %s41
      %s99 = ssub.s32 %s24, %s33
      %s100 = sor.u32 %s98, %s99
      %p101 = scmp.eq.s32.totalorder %s100, 0
      %s103 = sadd.s32 %s102, 1
      %s104 = scalar_select %p101, %s102, %s103
      %p107 = pneg %p101
      %p108 = scmp.eq.s32.totalorder %s15, 1
      %p109 = por %p107, %p108
      %p110 = scmp.ne.s32.totalorder %s102, %s105
      %p111 = scmp.eq.s32.totalorder %s15, 0
      %p112 = por %p110, %p111
      %p113 = scmp.ne.s32.totalorder %s102, %s105
      %p114 = scmp.eq.s32.totalorder %s20, 1
      %p115 = por %p113, %p114
      %p116 = scmp.ne.s32.totalorder %s105, %s106
      %p117 = scmp.eq.s32.totalorder %s20, 0
      %p118 = por %p116, %p117
      %p119 = scmp.ne.s32.totalorder %s105, %s106
      %p120 = scmp.eq.s32.totalorder %s21, 1
      %p121 = por %p119, %p120
      %p123 = scmp.ne.s32.totalorder %s106, %s122
      %p124 = scmp.eq.s32.totalorder %s21, 0
      %p125 = por %p123, %p124
      %s126 = ssub.s32 %s22, %s41
      %s127 = ssub.s32 %s24, %s33
      %s128 = sor.u32 %s126, %s127
      %p129 = scmp.eq.s32.totalorder %s128, 0
      %s131 = sadd.s32 %s130, 1
      %s132 = scalar_select %p129, %s130, %s131
      %p135 = pneg %p129
      %p136 = scmp.eq.s32.totalorder %s15, 1
      %p137 = por %p135, %p136
      %p138 = scmp.ne.s32.totalorder %s130, %s133
      %p139 = scmp.eq.s32.totalorder %s15, 0
      %p140 = por %p138, %p139
      %p141 = scmp.ne.s32.totalorder %s130, %s133
      %p142 = scmp.eq.s32.totalorder %s20, 1
      %p143 = por %p141, %p142
      %p144 = scmp.ne.s32.totalorder %s133, %s134
      %p145 = scmp.eq.s32.totalorder %s20, 0
      %p146 = por %p144, %p145
      %p147 = scmp.ne.s32.totalorder %s133, %s134
      %p148 = scmp.eq.s32.totalorder %s21, 1
      %p149 = por %p147, %p148
      %p151 = scmp.ne.s32.totalorder %s134, %s150
      %p152 = scmp.eq.s32.totalorder %s21, 0
      %p153 = por %p151, %p152
      %s155 = sadd.s32 %s154, 1
      %p158 = scmp.eq.s32.totalorder %s15, 1
      %p159 = scmp.ne.s32.totalorder %s154, %s156
      %p160 = scmp.eq.s32.totalorder %s15, 0
      %p161 = por %p159, %p160
      %p162 = scmp.ne.s32.totalorder %s154, %s156
      %p163 = scmp.eq.s32.totalorder %s20, 1
      %p164 = por %p162, %p163
      %p165 = scmp.ne.s32.totalorder %s156, %s157
      %p166 = scmp.eq.s32.totalorder %s20, 0
      %p167 = por %p165, %p166
      %p168 = scmp.ne.s32.totalorder %s156, %s157
      %p169 = scmp.eq.s32.totalorder %s21, 1
      %p170 = por %p168, %p169
      %p172 = scmp.ne.s32.totalorder %s157, %s171
      %p173 = scmp.eq.s32.totalorder %s21, 0
      %p174 = por %p172, %p173
      %s176 = sadd.s32 %s175, 1
      %p179 = scmp.eq.s32.totalorder %s15, 1
      %p180 = scmp.ne.s32.totalorder %s175, %s177
      %p181 = scmp.eq.s32.totalorder %s15, 0
      %p182 = por %p180, %p181
      %p183 = scmp.ne.s32.totalorder %s175, %s177
      %p184 = scmp.eq.s32.totalorder %s20, 1
      %p185 = por %p183, %p184
      %p186 = scmp.ne.s32.totalorder %s177, %s178
      %p187 = scmp.eq.s32.totalorder %s20, 0
      %p188 = por %p186, %p187
      %p189 = scmp.ne.s32.totalorder %s177, %s178
      %p190 = scmp.eq.s32.totalorder %s21, 1
      %p191 = por %p189, %p190
      %p193 = scmp.ne.s32.totalorder %s178, %s192
      %p194 = scmp.eq.s32.totalorder %s21, 0
      %p195 = por %p193, %p194
      %s196 = ssub.s32 %s22, %s41
      %s197 = ssub.s32 %s23, %s37
      %s198 = sor.u32 %s196, %s197
      %p199 = scmp.eq.s32.totalorder %s198, 0
      %s201 = sadd.s32 %s200, 1
      %s202 = scalar_select %p199, %s200, %s201
      %p205 = pneg %p199
      %p206 = scmp.eq.s32.totalorder %s15, 1
      %p207 = por %p205, %p206
      %p208 = scmp.ne.s32.totalorder %s200, %s203
      %p209 = scmp.eq.s32.totalorder %s15, 0
      %p210 = por %p208, %p209
      %p211 = scmp.ne.s32.totalorder %s200, %s203
      %p212 = scmp.eq.s32.totalorder %s20, 1
      %p213 = por %p211, %p212
      %p214 = scmp.ne.s32.totalorder %s203, %s204
      %p215 = scmp.eq.s32.totalorder %s20, 0
      %p216 = por %p214, %p215
      %p217 = scmp.ne.s32.totalorder %s203, %s204
      %p218 = scmp.eq.s32.totalorder %s21, 1
      %p219 = por %p217, %p218
      %p221 = scmp.ne.s32.totalorder %s204, %s220
      %p222 = scmp.eq.s32.totalorder %s21, 0
      %p223 = por %p221, %p222
      %p224 = scmp.le.s32.totalorder 1, %s15
      %p225 = scmp.lt.s32.totalorder %s15, 3
      %p226 = pnand %p224, %p225
      %p227 = pneg %p226
      // Predicated region
      $region9: #{multi_head_attention.3} parent=5 // pred_check
        _
      $region10: #{multi_head_attention.3} parent=5 // pred_check_branch
        %229 = sbr.rel (%p226) target = $region12
      $region11: #{multi_head_attention.3} parent=5 // pred_region
        %s230 = ssub.s32 %s15, 1
        // Predicated region
        $region13: #{multi_head_attention.3} parent=11 // pred_check
          %p231 = pneg %p167
        $region14: #{multi_head_attention.3} parent=11 // pred_check_branch
          %233 = sbr.rel (%p231) target = $region16
        $region15: #{multi_head_attention.3} parent=11 // pred_region
          _
        $region16: #{multi_head_attention.3} parent=11 // pred_fallthru
          _
        // Predicated region
        $region17: #{multi_head_attention.3} parent=11 // pred_check
          %p234 = pneg %p188
        $region18: #{multi_head_attention.3} parent=11 // pred_check_branch
          %236 = sbr.rel (%p234) target = $region20
        $region19: #{multi_head_attention.3} parent=11 // pred_region
          _
        $region20: #{multi_head_attention.3} parent=11 // pred_fallthru
          _
      $region12: #{multi_head_attention.3} parent=5 // pred_fallthru
        _
      %p237 = scmp.lt.s32.totalorder %s15, 2
      // Predicated region
      $region21: #{multi_head_attention.3} parent=5 // pred_check
        %p238 = pneg %p237
      $region22: #{multi_head_attention.3} parent=5 // pred_check_branch
        %240 = sbr.rel (%p238) target = $region24
      $region23: #{multi_head_attention.3} parent=5 // pred_region
        // Predicated region
        $region25: #{multi_head_attention.3} parent=23 // pred_check
          %p241 = pneg %p56
        $region26: #{multi_head_attention.3} parent=23 // pred_check_branch
          %243 = sbr.rel (%p241) target = $region28
        $region27: #{multi_head_attention.3} parent=23 // pred_region
          %p244 = scmp.lt.s32.totalorder %s22, 1
          %s245 = scalar_select %p244, %s22, 1
          %p246 = scmp.lt.s32.totalorder %s23, 0
          %s247 = scalar_select %p246, %s23, 0
          %s248 = smul.addr %s245, 4
          %s249 = sadd.s32 %s247, %s248
          %s250 = smul.addr %s249, 4
          %s251 = scalar_lea.vmem %s0, %s250
        $region28: #{multi_head_attention.3} parent=23 // pred_fallthru
          _
        // Predicated region
        $region29: #{multi_head_attention.3} parent=23 // pred_check
          %p252 = pneg %p84
        $region30: #{multi_head_attention.3} parent=23 // pred_check_branch
          %254 = sbr.rel (%p252) target = $region32
        $region31: #{multi_head_attention.3} parent=23 // pred_region
          %p255 = scmp.lt.s32.totalorder %s22, 1
          %s256 = scalar_select %p255, %s22, 1
          %p257 = scmp.lt.s32.totalorder %s24, 0
          %s258 = scalar_select %p257, %s24, 0
          %s259 = smul.addr %s256, 4
          %s260 = sadd.s32 %s258, %s259
          %s261 = smul.addr %s260, 4
          %s262 = scalar_lea.vmem %s1, %s261
        $region32: #{multi_head_attention.3} parent=23 // pred_fallthru
          _
        // Predicated region
        $region33: #{multi_head_attention.3} parent=23 // pred_check
          %p263 = pneg %p112
        $region34: #{multi_head_attention.3} parent=23 // pred_check_branch
          %265 = sbr.rel (%p263) target = $region36
        $region35: #{multi_head_attention.3} parent=23 // pred_region
          %p266 = scmp.lt.s32.totalorder %s22, 1
          %s267 = scalar_select %p266, %s22, 1
          %p268 = scmp.lt.s32.totalorder %s24, 0
          %s269 = scalar_select %p268, %s24, 0
          %s270 = smul.addr %s267, 4
          %s271 = sadd.s32 %s269, %s270
          %s272 = smul.addr %s271, 4
          %s273 = scalar_lea.vmem %s2, %s272
        $region36: #{multi_head_attention.3} parent=23 // pred_fallthru
          _
        // Predicated region
        $region37: #{multi_head_attention.3} parent=23 // pred_check
          %p274 = pneg %p140
        $region38: #{multi_head_attention.3} parent=23 // pred_check_branch
          %276 = sbr.rel (%p274) target = $region40
        $region39: #{multi_head_attention.3} parent=23 // pred_region
          %p277 = scmp.lt.s32.totalorder %s22, 1
          %s278 = scalar_select %p277, %s22, 1
          %p279 = scmp.lt.s32.totalorder %s24, 0
          %s280 = scalar_select %p279, %s24, 0
          %s281 = sadd.s32 %s280, %s278
          %s282 = scalar_lea.vmem %s3, %s281
        $region40: #{multi_head_attention.3} parent=23 // pred_fallthru
          _
      $region24: #{multi_head_attention.3} parent=5 // pred_fallthru
        _
      %p283 = scmp.le.s32.totalorder 1, %s15
      %p284 = scmp.lt.s32.totalorder %s15, 3
      %p285 = pnand %p283, %p284
      %p286 = pneg %p285
      // Predicated region
      $region41: #{multi_head_attention.3} parent=5 // pred_check
        _
      $region42: #{multi_head_attention.3} parent=5 // pred_check_branch
        %288 = sbr.rel (%p285) target = $region44
      $region43: #{multi_head_attention.3} parent=5 // pred_region
        %s289 = ssub.s32 %s15, 1
        %p290 = scmp.lt.s32.totalorder %s25, 1
        %s291 = scalar_select %p290, %s25, 1
        %p292 = scmp.lt.s32.totalorder %s26, 0
        %s293 = scalar_select %p292, %s26, 0
        %s294 = smul.addr %s291, 4
        %s295 = sadd.s32 %s293, %s294
        %s296 = smul.addr %s295, 4
        %s297 = scalar_lea.vmem %s0, %s296
        %p298 = pneg %p62
        %p299 = pneg %p59
        %p300 = scmp.lt.s32.totalorder %s25, 1
        %s301 = scalar_select %p300, %s25, 1
        %p302 = scmp.lt.s32.totalorder %s27, 0
        %s303 = scalar_select %p302, %s27, 0
        %s304 = smul.addr %s301, 4
        %s305 = sadd.s32 %s303, %s304
        %s306 = smul.addr %s305, 4
        %s307 = scalar_lea.vmem %s1, %s306
        %p308 = pneg %p90
        %p309 = pneg %p87
        %p310 = scmp.lt.s32.totalorder %s25, 1
        %s311 = scalar_select %p310, %s25, 1
        %p312 = scmp.lt.s32.totalorder %s27, 0
        %s313 = scalar_select %p312, %s27, 0
        %s314 = smul.addr %s311, 4
        %s315 = sadd.s32 %s313, %s314
        %s316 = smul.addr %s315, 4
        %s317 = scalar_lea.vmem %s2, %s316
        %p318 = pneg %p118
        %p319 = pneg %p115
        %p320 = scmp.lt.s32.totalorder %s25, 1
        %s321 = scalar_select %p320, %s25, 1
        %p322 = scmp.lt.s32.totalorder %s27, 0
        %s323 = scalar_select %p322, %s27, 0
        %s324 = sadd.s32 %s323, %s321
        %s325 = scalar_lea.vmem %s3, %s324
        %p326 = pneg %p146
        %p327 = pneg %p143
        %p328 = pneg %p167
        %p329 = pneg %p164
        %p330 = pneg %p188
        %p331 = pneg %p185
        %p332 = pneg %p216
        %p333 = pneg %p213
        %s334 = sand.u32 %s203, 1
        %s335 = scalar_lea.sflag [#allocation6], %s334
        %s336 = sand.u32 %s203, 1
        %s337 = smul.addr %s336, 8
        %s338 = scalar_lea.vmem [#allocation5], %s337
        %p339 = scmp.lt.s32.totalorder %s25, 1
        %s340 = scalar_select %p339, %s25, 1
        %p341 = scmp.lt.s32.totalorder %s26, 0
        %s342 = scalar_select %p341, %s26, 0
        %s343 = smul.addr %s340, 4
        %s344 = sadd.s32 %s342, %s343
        %s345 = smul.addr %s344, 4
        %s346 = scalar_lea.vmem %s0, %s345
        %p347 = scmp.lt.s32.totalorder %s25, 1
        %s348 = scalar_select %p347, %s25, 1
        %p349 = scmp.lt.s32.totalorder %s27, 0
        %s350 = scalar_select %p349, %s27, 0
        %s351 = smul.addr %s348, 4
        %s352 = sadd.s32 %s350, %s351
        %s353 = smul.addr %s352, 4
        %s354 = scalar_lea.vmem %s1, %s353
        %p355 = scmp.lt.s32.totalorder %s25, 1
        %s356 = scalar_select %p355, %s25, 1
        %p357 = scmp.lt.s32.totalorder %s27, 0
        %s358 = scalar_select %p357, %s27, 0
        %s359 = smul.addr %s356, 4
        %s360 = sadd.s32 %s358, %s359
        %s361 = smul.addr %s360, 4
        %s362 = scalar_lea.vmem %s2, %s361
        %p363 = scmp.lt.s32.totalorder %s25, 1
        %s364 = scalar_select %p363, %s25, 1
        %p365 = scmp.lt.s32.totalorder %s27, 0
        %s366 = scalar_select %p365, %s27, 0
        %s367 = sadd.s32 %s366, %s364
        %s368 = scalar_lea.vmem %s3, %s367
        %p370 = scmp.eq.s32.totalorder %s27, 0
        // Predicated region
        $region45: #{multi_head_attention.3} parent=43 // pred_check
          %p371 = pneg %p370
        $region46: #{multi_head_attention.3} parent=43 // pred_check_branch
          %373 = sbr.rel (%p371) target = $region48
        $region47: #{multi_head_attention.3} parent=43 // pred_region
          %vm374 = vcmask 7168
          %375 = vst.msk [vmem:[#allocation2] sm:$0xff] %vm374, -inf
          %376 = vst.msk [vmem:[#allocation2 + $0x8] sm:$0xff] %vm374, -inf
          %377 = vst.msk [vmem:[#allocation2 + $0x10] sm:$0xff] %vm374, -inf
          %378 = vst.msk [vmem:[#allocation2 + $0x18] sm:$0xff] %vm374, -inf
          %379 = vst.msk [vmem:[#allocation3] sm:$0xff] %vm374, 0.0
          %380 = vst.msk [vmem:[#allocation3 + $0x8] sm:$0xff] %vm374, 0.0
          %381 = vst.msk [vmem:[#allocation3 + $0x10] sm:$0xff] %vm374, 0.0
          %382 = vst.msk [vmem:[#allocation3 + $0x18] sm:$0xff] %vm374, 0.0
          %vm383 = vcmask 64512
          %384 = vst.msk [vmem:[#allocation4] sm:$0xff] %vm383, 0.0
          %385 = vst.msk [vmem:[#allocation4 + $0x8] sm:$0xff] %vm383, 0.0
          %386 = vst.msk [vmem:[#allocation4 + $0x10] sm:$0xff] %vm383, 0.0
          %387 = vst.msk [vmem:[#allocation4 + $0x18] sm:$0xff] %vm383, 0.0
        $region48: #{multi_head_attention.3} parent=43 // pred_fallthru
          _
        %v388 = vld [vmem:[%s346] sm:$0xf]
        %v389 = vld [vmem:[%s346 + $0x4] sm:$0xf]
        %v390 = vld [vmem:[%s346 + $0x8] sm:$0xf]
        %v391 = vld [vmem:[%s346 + $0xc] sm:$0xf]
        %v392 = vld [vmem:[%s354] sm:$0xf]
        %v393 = vld [vmem:[%s354 + $0x4] sm:$0xf]
        %v394 = vld [vmem:[%s354 + $0x8] sm:$0xf]
        %v395 = vld [vmem:[%s354 + $0xc] sm:$0xf]
        %v396 = vld [vmem:[%s362] sm:$0xf]
        %v397 = vld [vmem:[%s362 + $0x4] sm:$0xf]
        %v398 = vld [vmem:[%s362 + $0x8] sm:$0xf]
        %v399 = vld [vmem:[%s362 + $0xc] sm:$0xf]
        %vm400 = vcmask 64512
        %v402 = vsel %vm400, %v388, 0
        %v405 = vsel %vm400, %v392, 0
        %407 = vmatprep.subr.bf16.mxu0 0
        %408 = vmatpush1.bf16.xpose.msra.mxu0 0
        %409 = vmatprep.subr.bf16.mxu0 0
        %410 = vmatpush1.bf16.xpose.msra.mxu0 0
        %411 = vmatprep.subr.bf16.mxu0 0
        %412 = vmatpush1.bf16.xpose.msra.mxu0 0
        %413 = vmatprep.subr.bf16.mxu0 0
        %414 = vmatpush1.bf16.xpose.msra.mxu0 0
        %415 = vmatprep.subr.bf16.mxu0 0
        %416 = vmatpush1.bf16.xpose.msra.mxu0 0
        %417 = vmatprep.subr.bf16.mxu0 0
        %418 = vmatpush1.bf16.xpose.msra.mxu0 0
        %419 = vmatprep.subr.bf16.mxu0 0
        %420 = vmatpush1.bf16.xpose.msra.mxu0 0
        %421 = vmatprep.subr.bf16.mxu0 0
        %422 = vmatpush1.bf16.xpose.msra.mxu0 %v405
        %423 = vmatprep.subr.bf16.mxu0 0
        %424 = vmatpush2.bf16.xpose.msra.mxu0 0
        %425 = vmatprep.subr.bf16.mxu0 0
        %426 = vmatpush2.bf16.xpose.msra.mxu0 0
        %427 = vmatprep.subr.bf16.mxu0 0
        %428 = vmatpush2.bf16.xpose.msra.mxu0 0
        %429 = vmatprep.subr.bf16.mxu0 0
        %430 = vmatpush2.bf16.xpose.msra.mxu0 0
        %431 = vmatprep.subr.bf16.mxu0 0
        %432 = vmatpush2.bf16.xpose.msra.mxu0 0
        %433 = vmatprep.subr.bf16.mxu0 0
        %434 = vmatpush2.bf16.xpose.msra.mxu0 0
        %435 = vmatprep.subr.bf16.mxu0 0
        %436 = vmatpush2.bf16.xpose.msra.mxu0 0
        %437 = vmatprep.subr.bf16.mxu0 0
        %438 = vmatpush2.bf16.xpose.msra.mxu0 0
        %439 = vmatprep.mubr.bf16.mxu0 0
        %440 = vmatmul.mubr.bf16.gmra.mxu0 %v402
        %v441 = vpop.f32.mrf.mxu0
        %v442 = vadd.f32 0.0, %v441
        %v443 = vpop.f32.mrf.mxu0
        %v444 = vpop.f32.mrf.mxu0
        %v445 = vpop.f32.mrf.mxu0
        %446 = vdwg.mxu0
        %v448 = vsel %vm400, %v389, 0
        %v451 = vsel %vm400, %v393, 0
        %453 = vmatprep.subr.bf16.mxu0 0
        %454 = vmatpush1.bf16.xpose.msra.mxu0 0
        %455 = vmatprep.subr.bf16.mxu0 0
        %456 = vmatpush1.bf16.xpose.msra.mxu0 0
        %457 = vmatprep.subr.bf16.mxu0 0
        %458 = vmatpush1.bf16.xpose.msra.mxu0 0
        %459 = vmatprep.subr.bf16.mxu0 0
        %460 = vmatpush1.bf16.xpose.msra.mxu0 0
        %461 = vmatprep.subr.bf16.mxu0 0
        %462 = vmatpush1.bf16.xpose.msra.mxu0 0
        %463 = vmatprep.subr.bf16.mxu0 0
        %464 = vmatpush1.bf16.xpose.msra.mxu0 0
        %465 = vmatprep.subr.bf16.mxu0 0
        %466 = vmatpush1.bf16.xpose.msra.mxu0 0
        %467 = vmatprep.subr.bf16.mxu0 0
        %468 = vmatpush1.bf16.xpose.msra.mxu0 %v451
        %469 = vmatprep.subr.bf16.mxu0 0
        %470 = vmatpush2.bf16.xpose.msra.mxu0 0
        %471 = vmatprep.subr.bf16.mxu0 0
        %472 = vmatpush2.bf16.xpose.msra.mxu0 0
        %473 = vmatprep.subr.bf16.mxu0 0
        %474 = vmatpush2.bf16.xpose.msra.mxu0 0
        %475 = vmatprep.subr.bf16.mxu0 0
        %476 = vmatpush2.bf16.xpose.msra.mxu0 0
        %477 = vmatprep.subr.bf16.mxu0 0
        %478 = vmatpush2.bf16.xpose.msra.mxu0 0
        %479 = vmatprep.subr.bf16.mxu0 0
        %480 = vmatpush2.bf16.xpose.msra.mxu0 0
        %481 = vmatprep.subr.bf16.mxu0 0
        %482 = vmatpush2.bf16.xpose.msra.mxu0 0
        %483 = vmatprep.subr.bf16.mxu0 0
        %484 = vmatpush2.bf16.xpose.msra.mxu0 0
        %485 = vmatprep.mubr.bf16.mxu0 0
        %486 = vmatmul.mubr.bf16.gmra.mxu0 %v448
        %v487 = vpop.f32.mrf.mxu0
        %v488 = vadd.f32 0.0, %v487
        %v489 = vpop.f32.mrf.mxu0
        %v490 = vpop.f32.mrf.mxu0
        %v491 = vpop.f32.mrf.mxu0
        %492 = vdwg.mxu0
        %v494 = vsel %vm400, %v390, 0
        %v497 = vsel %vm400, %v394, 0
        %499 = vmatprep.subr.bf16.mxu0 0
        %500 = vmatpush1.bf16.xpose.msra.mxu0 0
        %501 = vmatprep.subr.bf16.mxu0 0
        %502 = vmatpush1.bf16.xpose.msra.mxu0 0
        %503 = vmatprep.subr.bf16.mxu0 0
        %504 = vmatpush1.bf16.xpose.msra.mxu0 0
        %505 = vmatprep.subr.bf16.mxu0 0
        %506 = vmatpush1.bf16.xpose.msra.mxu0 0
        %507 = vmatprep.subr.bf16.mxu0 0
        %508 = vmatpush1.bf16.xpose.msra.mxu0 0
        %509 = vmatprep.subr.bf16.mxu0 0
        %510 = vmatpush1.bf16.xpose.msra.mxu0 0
        %511 = vmatprep.subr.bf16.mxu0 0
        %512 = vmatpush1.bf16.xpose.msra.mxu0 0
        %513 = vmatprep.subr.bf16.mxu0 0
        %514 = vmatpush1.bf16.xpose.msra.mxu0 %v497
        %515 = vmatprep.subr.bf16.mxu0 0
        %516 = vmatpush2.bf16.xpose.msra.mxu0 0
        %517 = vmatprep.subr.bf16.mxu0 0
        %518 = vmatpush2.bf16.xpose.msra.mxu0 0
        %519 = vmatprep.subr.bf16.mxu0 0
        %520 = vmatpush2.bf16.xpose.msra.mxu0 0
        %521 = vmatprep.subr.bf16.mxu0 0
        %522 = vmatpush2.bf16.xpose.msra.mxu0 0
        %523 = vmatprep.subr.bf16.mxu0 0
        %524 = vmatpush2.bf16.xpose.msra.mxu0 0
        %525 = vmatprep.subr.bf16.mxu0 0
        %526 = vmatpush2.bf16.xpose.msra.mxu0 0
        %527 = vmatprep.subr.bf16.mxu0 0
        %528 = vmatpush2.bf16.xpose.msra.mxu0 0
        %529 = vmatprep.subr.bf16.mxu0 0
        %530 = vmatpush2.bf16.xpose.msra.mxu0 0
        %531 = vmatprep.mubr.bf16.mxu0 0
        %532 = vmatmul.mubr.bf16.gmra.mxu0 %v494
        %v533 = vpop.f32.mrf.mxu0
        %v534 = vadd.f32 0.0, %v533
        %v535 = vpop.f32.mrf.mxu0
        %v536 = vpop.f32.mrf.mxu0
        %v537 = vpop.f32.mrf.mxu0
        %538 = vdwg.mxu0
        %v540 = vsel %vm400, %v391, 0
        %v543 = vsel %vm400, %v395, 0
        %545 = vmatprep.subr.bf16.mxu0 0
        %546 = vmatpush1.bf16.xpose.msra.mxu0 0
        %547 = vmatprep.subr.bf16.mxu0 0
        %548 = vmatpush1.bf16.xpose.msra.mxu0 0
        %549 = vmatprep.subr.bf16.mxu0 0
        %550 = vmatpush1.bf16.xpose.msra.mxu0 0
        %551 = vmatprep.subr.bf16.mxu0 0
        %552 = vmatpush1.bf16.xpose.msra.mxu0 0
        %553 = vmatprep.subr.bf16.mxu0 0
        %554 = vmatpush1.bf16.xpose.msra.mxu0 0
        %555 = vmatprep.subr.bf16.mxu0 0
        %556 = vmatpush1.bf16.xpose.msra.mxu0 0
        %557 = vmatprep.subr.bf16.mxu0 0
        %558 = vmatpush1.bf16.xpose.msra.mxu0 0
        %559 = vmatprep.subr.bf16.mxu0 0
        %560 = vmatpush1.bf16.xpose.msra.mxu0 %v543
        %561 = vmatprep.subr.bf16.mxu0 0
        %562 = vmatpush2.bf16.xpose.msra.mxu0 0
        %563 = vmatprep.subr.bf16.mxu0 0
        %564 = vmatpush2.bf16.xpose.msra.mxu0 0
        %565 = vmatprep.subr.bf16.mxu0 0
        %566 = vmatpush2.bf16.xpose.msra.mxu0 0
        %567 = vmatprep.subr.bf16.mxu0 0
        %568 = vmatpush2.bf16.xpose.msra.mxu0 0
        %569 = vmatprep.subr.bf16.mxu0 0
        %570 = vmatpush2.bf16.xpose.msra.mxu0 0
        %571 = vmatprep.subr.bf16.mxu0 0
        %572 = vmatpush2.bf16.xpose.msra.mxu0 0
        %573 = vmatprep.subr.bf16.mxu0 0
        %574 = vmatpush2.bf16.xpose.msra.mxu0 0
        %575 = vmatprep.subr.bf16.mxu0 0
        %576 = vmatpush2.bf16.xpose.msra.mxu0 0
        %577 = vmatprep.mubr.bf16.mxu0 0
        %578 = vmatmul.mubr.bf16.gmra.mxu0 %v540
        %v579 = vpop.f32.mrf.mxu0
        %v580 = vadd.f32 0.0, %v579
        %v581 = vpop.f32.mrf.mxu0
        %v582 = vpop.f32.mrf.mxu0
        %v583 = vpop.f32.mrf.mxu0
        %584 = vdwg.mxu0
        %v585 = vld [vmem:[%s368] sm:$0x1]
        %vm586 = vcmp.gt.s32.totalorder %v585, 0
        %v587 = vsel %vm586, 1, 0
        %v588 = vlaneseq
        %v589 = vshrl.u32 %v588, 7
        %v590 = vsub.s32 0, %v589
        %v591 = vrot.slane %v587, %v590
        %vm592 = vcmp.eq.s32.totalorder %v591, 1
        %v593 = vsel %vm592, %v442, -1e+30
        %v594 = vsel %vm592, %v488, -1e+30
        %v595 = vsel %vm592, %v534, -1e+30
        %v596 = vsel %vm592, %v580, -1e+30
        %v597 = vld [vmem:[#allocation2] sm:$0xff]
        %v598 = vld [vmem:[#allocation2 + $0x8] sm:$0xff]
        %v599 = vld [vmem:[#allocation2 + $0x10] sm:$0xff]
        %v600 = vld [vmem:[#allocation2 + $0x18] sm:$0xff]
        %v601 = vsel %vm400, %v593, -inf
        %602 = vmax.xlane.f32.xlu0 %v601
        %v603 = vpop.xlane.xlu0 %602
        %v604 = vsel %vm400, %v594, -inf
        %605 = vmax.xlane.f32.xlu0 %v604
        %v606 = vpop.xlane.xlu0 %605
        %v607 = vsel %vm400, %v595, -inf
        %608 = vmax.xlane.f32.xlu0 %v607
        %v609 = vpop.xlane.xlu0 %608
        %v610 = vsel %vm400, %v596, -inf
        %611 = vmax.xlane.f32.xlu0 %v610
        %v612 = vpop.xlane.xlu0 %611
        %v613 = vmax.f32 %v597, %v603
        %v614 = vmax.f32 %v598, %v606
        %v615 = vmax.f32 %v599, %v609
        %v616 = vmax.f32 %v600, %v612
        %v617 = vsub.f32 %v597, %v613
        %v618 = vsub.f32 %v598, %v614
        %v619 = vsub.f32 %v599, %v615
        %v620 = vsub.f32 %v600, %v616
        %v621 = vmul.f32 %v617, 1.442695
        %v622 = vpow.pop %v621
        %v623 = vmul.f32 %v618, 1.442695
        %v624 = vpow.pop %v623
        %v625 = vmul.f32 %v619, 1.442695
        %v626 = vpow.pop %v625
        %v627 = vmul.f32 %v620, 1.442695
        %v628 = vpow.pop %v627
        %630 = vset.pattern.permute.xlu0 0
        %631 = vperm.xlu0 %630, %v613
        %v632 = vpop.permute.xlu0 %631
        %635 = vset.pattern.permute.xlu0 0
        %636 = vperm.xlu0 %635, %v614
        %v637 = vpop.permute.xlu0 %636
        %640 = vset.pattern.permute.xlu0 0
        %641 = vperm.xlu0 %640, %v615
        %v642 = vpop.permute.xlu0 %641
        %645 = vset.pattern.permute.xlu0 0
        %646 = vperm.xlu0 %645, %v616
        %v647 = vpop.permute.xlu0 %646
        %v649 = vsub.f32 %v593, %v632
        %v650 = vsub.f32 %v594, %v637
        %v651 = vsub.f32 %v595, %v642
        %v652 = vsub.f32 %v596, %v647
        %v653 = vmul.f32 %v649, 1.442695
        %v654 = vpow.pop %v653
        %v655 = vmul.f32 %v650, 1.442695
        %v656 = vpow.pop %v655
        %v657 = vmul.f32 %v651, 1.442695
        %v658 = vpow.pop %v657
        %v659 = vmul.f32 %v652, 1.442695
        %v660 = vpow.pop %v659
        %v661 = vld [vmem:[#allocation3] sm:$0xff]
        %v662 = vld [vmem:[#allocation3 + $0x8] sm:$0xff]
        %v663 = vld [vmem:[#allocation3 + $0x10] sm:$0xff]
        %v664 = vld [vmem:[#allocation3 + $0x18] sm:$0xff]
        %v665 = vmul.f32 %v622, %v661
        %v666 = vmul.f32 %v624, %v662
        %v667 = vmul.f32 %v626, %v663
        %v668 = vmul.f32 %v628, %v664
        %v669 = vsel %vm400, %v654, 0.0
        %670 = vadd.xlane.f32.xlu0 %v669
        %v671 = vpop.xlane.xlu0 %670
        %v672 = vsel %vm400, %v656, 0.0
        %673 = vadd.xlane.f32.xlu0 %v672
        %v674 = vpop.xlane.xlu0 %673
        %v675 = vsel %vm400, %v658, 0.0
        %676 = vadd.xlane.f32.xlu0 %v675
        %v677 = vpop.xlane.xlu0 %676
        %v678 = vsel %vm400, %v660, 0.0
        %679 = vadd.xlane.f32.xlu0 %v678
        %v680 = vpop.xlane.xlu0 %679
        %v681 = vadd.f32 %v665, %v671
        %v682 = vadd.f32 %v666, %v674
        %v683 = vadd.f32 %v667, %v677
        %v684 = vadd.f32 %v668, %v680
        %vm685 = vcmask 7168
        %686 = vst.msk [vmem:[#allocation3] sm:$0xff] %vm685, %v681
        %687 = vst.msk [vmem:[#allocation3 + $0x8] sm:$0xff] %vm685, %v682
        %688 = vst.msk [vmem:[#allocation3 + $0x10] sm:$0xff] %vm685, %v683
        %689 = vst.msk [vmem:[#allocation3 + $0x18] sm:$0xff] %vm685, %v684
        %v690 = vld [vmem:[#allocation4] sm:$0xff]
        %v691 = vld [vmem:[#allocation4 + $0x8] sm:$0xff]
        %v692 = vld [vmem:[#allocation4 + $0x10] sm:$0xff]
        %v693 = vld [vmem:[#allocation4 + $0x18] sm:$0xff]
        %695 = vset.pattern.permute.xlu0 0
        %696 = vperm.xlu0 %695, %v622
        %v697 = vpop.permute.xlu0 %696
        %700 = vset.pattern.permute.xlu0 0
        %701 = vperm.xlu0 %700, %v624
        %v702 = vpop.permute.xlu0 %701
        %705 = vset.pattern.permute.xlu0 0
        %706 = vperm.xlu0 %705, %v626
        %v707 = vpop.permute.xlu0 %706
        %710 = vset.pattern.permute.xlu0 0
        %711 = vperm.xlu0 %710, %v628
        %v712 = vpop.permute.xlu0 %711
        %v714 = vmul.f32 %v697, %v690
        %v715 = vmul.f32 %v702, %v691
        %v716 = vmul.f32 %v707, %v692
        %v717 = vmul.f32 %v712, %v693
        %v718 = vpack.c.bf16 %v654, %v654
        %v719 = vpack.c.bf16 %v656, %v656
        %v720 = vpack.c.bf16 %v658, %v658
        %v721 = vpack.c.bf16 %v660, %v660
        %v723 = vsel %vm400, %v718, 0
        %vm725 = vcmask 1043456
        %v727 = vsel %vm725, %v396, 0
        %729 = vmatprep.subr.bf16.mxu0 0
        %730 = vmatpush1.bf16.msra.mxu0 0
        %731 = vmatprep.subr.bf16.mxu0 0
        %732 = vmatpush1.bf16.msra.mxu0 0
        %733 = vmatprep.subr.bf16.mxu0 0
        %734 = vmatpush1.bf16.msra.mxu0 0
        %735 = vmatprep.subr.bf16.mxu0 0
        %736 = vmatpush1.bf16.msra.mxu0 0
        %737 = vmatprep.subr.bf16.mxu0 0
        %738 = vmatpush1.bf16.msra.mxu0 0
        %739 = vmatprep.subr.bf16.mxu0 0
        %740 = vmatpush1.bf16.msra.mxu0 0
        %741 = vmatprep.subr.bf16.mxu0 0
        %742 = vmatpush1.bf16.msra.mxu0 0
        %743 = vmatprep.subr.bf16.mxu0 0
        %744 = vmatpush1.bf16.msra.mxu0 %v727
        %745 = vmatprep.subr.bf16.mxu0 0
        %746 = vmatpush2.bf16.msra.mxu0 0
        %747 = vmatprep.subr.bf16.mxu0 0
        %748 = vmatpush2.bf16.msra.mxu0 0
        %749 = vmatprep.subr.bf16.mxu0 0
        %750 = vmatpush2.bf16.msra.mxu0 0
        %751 = vmatprep.subr.bf16.mxu0 0
        %752 = vmatpush2.bf16.msra.mxu0 0
        %753 = vmatprep.subr.bf16.mxu0 0
        %754 = vmatpush2.bf16.msra.mxu0 0
        %755 = vmatprep.subr.bf16.mxu0 0
        %756 = vmatpush2.bf16.msra.mxu0 0
        %757 = vmatprep.subr.bf16.mxu0 0
        %758 = vmatpush2.bf16.msra.mxu0 0
        %759 = vmatprep.subr.bf16.mxu0 0
        %760 = vmatpush2.bf16.msra.mxu0 0
        %761 = vmatprep.mubr.bf16.mxu0 0
        %762 = vmatmul.mubr.bf16.gmra.mxu0 %v723
        %v763 = vpop.f32.mrf.mxu0
        %v764 = vadd.f32 0.0, %v763
        %v765 = vpop.f32.mrf.mxu0
        %v766 = vpop.f32.mrf.mxu0
        %v767 = vpop.f32.mrf.mxu0
        %768 = vdwg.mxu0
        %v770 = vsel %vm400, %v719, 0
        %v773 = vsel %vm725, %v397, 0
        %775 = vmatprep.subr.bf16.mxu0 0
        %776 = vmatpush1.bf16.msra.mxu0 0
        %777 = vmatprep.subr.bf16.mxu0 0
        %778 = vmatpush1.bf16.msra.mxu0 0
        %779 = vmatprep.subr.bf16.mxu0 0
        %780 = vmatpush1.bf16.msra.mxu0 0
        %781 = vmatprep.subr.bf16.mxu0 0
        %782 = vmatpush1.bf16.msra.mxu0 0
        %783 = vmatprep.subr.bf16.mxu0 0
        %784 = vmatpush1.bf16.msra.mxu0 0
        %785 = vmatprep.subr.bf16.mxu0 0
        %786 = vmatpush1.bf16.msra.mxu0 0
        %787 = vmatprep.subr.bf16.mxu0 0
        %788 = vmatpush1.bf16.msra.mxu0 0
        %789 = vmatprep.subr.bf16.mxu0 0
        %790 = vmatpush1.bf16.msra.mxu0 %v773
        %791 = vmatprep.subr.bf16.mxu0 0
        %792 = vmatpush2.bf16.msra.mxu0 0
        %793 = vmatprep.subr.bf16.mxu0 0
        %794 = vmatpush2.bf16.msra.mxu0 0
        %795 = vmatprep.subr.bf16.mxu0 0
        %796 = vmatpush2.bf16.msra.mxu0 0
        %797 = vmatprep.subr.bf16.mxu0 0
        %798 = vmatpush2.bf16.msra.mxu0 0
        %799 = vmatprep.subr.bf16.mxu0 0
        %800 = vmatpush2.bf16.msra.mxu0 0
        %801 = vmatprep.subr.bf16.mxu0 0
        %802 = vmatpush2.bf16.msra.mxu0 0
        %803 = vmatprep.subr.bf16.mxu0 0
        %804 = vmatpush2.bf16.msra.mxu0 0
        %805 = vmatprep.subr.bf16.mxu0 0
        %806 = vmatpush2.bf16.msra.mxu0 0
        %807 = vmatprep.mubr.bf16.mxu0 0
        %808 = vmatmul.mubr.bf16.gmra.mxu0 %v770
        %v809 = vpop.f32.mrf.mxu0
        %v810 = vadd.f32 0.0, %v809
        %v811 = vpop.f32.mrf.mxu0
        %v812 = vpop.f32.mrf.mxu0
        %v813 = vpop.f32.mrf.mxu0
        %814 = vdwg.mxu0
        %v816 = vsel %vm400, %v720, 0
        %v819 = vsel %vm725, %v398, 0
        %821 = vmatprep.subr.bf16.mxu0 0
        %822 = vmatpush1.bf16.msra.mxu0 0
        %823 = vmatprep.subr.bf16.mxu0 0
        %824 = vmatpush1.bf16.msra.mxu0 0
        %825 = vmatprep.subr.bf16.mxu0 0
        %826 = vmatpush1.bf16.msra.mxu0 0
        %827 = vmatprep.subr.bf16.mxu0 0
        %828 = vmatpush1.bf16.msra.mxu0 0
        %829 = vmatprep.subr.bf16.mxu0 0
        %830 = vmatpush1.bf16.msra.mxu0 0
        %831 = vmatprep.subr.bf16.mxu0 0
        %832 = vmatpush1.bf16.msra.mxu0 0
        %833 = vmatprep.subr.bf16.mxu0 0
        %834 = vmatpush1.bf16.msra.mxu0 0
        %835 = vmatprep.subr.bf16.mxu0 0
        %836 = vmatpush1.bf16.msra.mxu0 %v819
        %837 = vmatprep.subr.bf16.mxu0 0
        %838 = vmatpush2.bf16.msra.mxu0 0
        %839 = vmatprep.subr.bf16.mxu0 0
        %840 = vmatpush2.bf16.msra.mxu0 0
        %841 = vmatprep.subr.bf16.mxu0 0
        %842 = vmatpush2.bf16.msra.mxu0 0
        %843 = vmatprep.subr.bf16.mxu0 0
        %844 = vmatpush2.bf16.msra.mxu0 0
        %845 = vmatprep.subr.bf16.mxu0 0
        %846 = vmatpush2.bf16.msra.mxu0 0
        %847 = vmatprep.subr.bf16.mxu0 0
        %848 = vmatpush2.bf16.msra.mxu0 0
        %849 = vmatprep.subr.bf16.mxu0 0
        %850 = vmatpush2.bf16.msra.mxu0 0
        %851 = vmatprep.subr.bf16.mxu0 0
        %852 = vmatpush2.bf16.msra.mxu0 0
        %853 = vmatprep.mubr.bf16.mxu0 0
        %854 = vmatmul.mubr.bf16.gmra.mxu0 %v816
        %v855 = vpop.f32.mrf.mxu0
        %v856 = vadd.f32 0.0, %v855
        %v857 = vpop.f32.mrf.mxu0
        %v858 = vpop.f32.mrf.mxu0
        %v859 = vpop.f32.mrf.mxu0
        %860 = vdwg.mxu0
        %v862 = vsel %vm400, %v721, 0
        %v865 = vsel %vm725, %v399, 0
        %867 = vmatprep.subr.bf16.mxu0 0
        %868 = vmatpush1.bf16.msra.mxu0 0
        %869 = vmatprep.subr.bf16.mxu0 0
        %870 = vmatpush1.bf16.msra.mxu0 0
        %871 = vmatprep.subr.bf16.mxu0 0
        %872 = vmatpush1.bf16.msra.mxu0 0
        %873 = vmatprep.subr.bf16.mxu0 0
        %874 = vmatpush1.bf16.msra.mxu0 0
        %875 = vmatprep.subr.bf16.mxu0 0
        %876 = vmatpush1.bf16.msra.mxu0 0
        %877 = vmatprep.subr.bf16.mxu0 0
        %878 = vmatpush1.bf16.msra.mxu0 0
        %879 = vmatprep.subr.bf16.mxu0 0
        %880 = vmatpush1.bf16.msra.mxu0 0
        %881 = vmatprep.subr.bf16.mxu0 0
        %882 = vmatpush1.bf16.msra.mxu0 %v865
        %883 = vmatprep.subr.bf16.mxu0 0
        %884 = vmatpush2.bf16.msra.mxu0 0
        %885 = vmatprep.subr.bf16.mxu0 0
        %886 = vmatpush2.bf16.msra.mxu0 0
        %887 = vmatprep.subr.bf16.mxu0 0
        %888 = vmatpush2.bf16.msra.mxu0 0
        %889 = vmatprep.subr.bf16.mxu0 0
        %890 = vmatpush2.bf16.msra.mxu0 0
        %891 = vmatprep.subr.bf16.mxu0 0
        %892 = vmatpush2.bf16.msra.mxu0 0
        %893 = vmatprep.subr.bf16.mxu0 0
        %894 = vmatpush2.bf16.msra.mxu0 0
        %895 = vmatprep.subr.bf16.mxu0 0
        %896 = vmatpush2.bf16.msra.mxu0 0
        %897 = vmatprep.subr.bf16.mxu0 0
        %898 = vmatpush2.bf16.msra.mxu0 0
        %899 = vmatprep.mubr.bf16.mxu0 0
        %900 = vmatmul.mubr.bf16.gmra.mxu0 %v862
        %v901 = vpop.f32.mrf.mxu0
        %v902 = vadd.f32 0.0, %v901
        %v903 = vpop.f32.mrf.mxu0
        %v904 = vpop.f32.mrf.mxu0
        %v905 = vpop.f32.mrf.mxu0
        %906 = vdwg.mxu0
        %v907 = vadd.f32 %v714, %v764
        %v908 = vadd.f32 %v715, %v810
        %v909 = vadd.f32 %v716, %v856
        %v910 = vadd.f32 %v717, %v902
        %911 = vst.msk [vmem:[#allocation4] sm:$0xff] %vm400, %v907
        %912 = vst.msk [vmem:[#allocation4 + $0x8] sm:$0xff] %vm400, %v908
        %913 = vst.msk [vmem:[#allocation4 + $0x10] sm:$0xff] %vm400, %v909
        %914 = vst.msk [vmem:[#allocation4 + $0x18] sm:$0xff] %vm400, %v910
        %915 = vst.msk [vmem:[#allocation2] sm:$0xff] %vm685, %v613
        %916 = vst.msk [vmem:[#allocation2 + $0x8] sm:$0xff] %vm685, %v614
        %917 = vst.msk [vmem:[#allocation2 + $0x10] sm:$0xff] %vm685, %v615
        %918 = vst.msk [vmem:[#allocation2 + $0x18] sm:$0xff] %vm685, %v616
        // Predicated region
        $region49: #{multi_head_attention.3} parent=43 // pred_check
          %p919 = pneg %p370
        $region50: #{multi_head_attention.3} parent=43 // pred_check_branch
          %921 = sbr.rel (%p919) target = $region52
        $region51: #{multi_head_attention.3} parent=43 // pred_region
          %v922 = vld [vmem:[#allocation3] sm:$0xff]
          %v923 = vld [vmem:[#allocation3 + $0x8] sm:$0xff]
          %v924 = vld [vmem:[#allocation3 + $0x10] sm:$0xff]
          %v925 = vld [vmem:[#allocation3 + $0x18] sm:$0xff]
          %v926 = vrcp.pop %v922
          %v927 = vrcp.pop %v923
          %v928 = vrcp.pop %v924
          %v929 = vrcp.pop %v925
          %v930 = vld [vmem:[#allocation4] sm:$0xff]
          %v931 = vld [vmem:[#allocation4 + $0x8] sm:$0xff]
          %v932 = vld [vmem:[#allocation4 + $0x10] sm:$0xff]
          %v933 = vld [vmem:[#allocation4 + $0x18] sm:$0xff]
          %935 = vset.pattern.permute.xlu0 0
          %936 = vperm.xlu0 %935, %v926
          %v937 = vpop.permute.xlu0 %936
          %940 = vset.pattern.permute.xlu0 0
          %941 = vperm.xlu0 %940, %v927
          %v942 = vpop.permute.xlu0 %941
          %945 = vset.pattern.permute.xlu0 0
          %946 = vperm.xlu0 %945, %v928
          %v947 = vpop.permute.xlu0 %946
          %950 = vset.pattern.permute.xlu0 0
          %951 = vperm.xlu0 %950, %v929
          %v952 = vpop.permute.xlu0 %951
          %v954 = vmul.f32 %v930, %v937
          %v955 = vmul.f32 %v931, %v942
          %v956 = vmul.f32 %v932, %v947
          %v957 = vmul.f32 %v933, %v952
          %v958 = vpack.c.bf16 %v954, %v954
          %v959 = vpack.c.bf16 %v955, %v955
          %v960 = vpack.c.bf16 %v956, %v956
          %v961 = vpack.c.bf16 %v957, %v957
          %v962 = vld [vmem:[%s4] sm:$0xf]
          %v963 = vld [vmem:[%s4 + $0x4] sm:$0xf]
          %v964 = vld [vmem:[%s4 + $0x8] sm:$0xf]
          %v965 = vld [vmem:[%s4 + $0xc] sm:$0xf]
          %v967 = vsel %vm400, %v959, 0
          %v970 = vsel %vm725, %v963, 0
          %972 = vmatprep.subr.bf16.mxu0 0
          %973 = vmatpush1.bf16.msra.mxu0 0
          %974 = vmatprep.subr.bf16.mxu0 0
          %975 = vmatpush1.bf16.msra.mxu0 0
          %976 = vmatprep.subr.bf16.mxu0 0
          %977 = vmatpush1.bf16.msra.mxu0 0
          %978 = vmatprep.subr.bf16.mxu0 0
          %979 = vmatpush1.bf16.msra.mxu0 0
          %980 = vmatprep.subr.bf16.mxu0 0
          %981 = vmatpush1.bf16.msra.mxu0 0
          %982 = vmatprep.subr.bf16.mxu0 0
          %983 = vmatpush1.bf16.msra.mxu0 0
          %984 = vmatprep.subr.bf16.mxu0 0
          %985 = vmatpush1.bf16.msra.mxu0 0
          %986 = vmatprep.subr.bf16.mxu0 0
          %987 = vmatpush1.bf16.msra.mxu0 %v970
          %988 = vmatprep.subr.bf16.mxu0 0
          %989 = vmatpush2.bf16.msra.mxu0 0
          %990 = vmatprep.subr.bf16.mxu0 0
          %991 = vmatpush2.bf16.msra.mxu0 0
          %992 = vmatprep.subr.bf16.mxu0 0
          %993 = vmatpush2.bf16.msra.mxu0 0
          %994 = vmatprep.subr.bf16.mxu0 0
          %995 = vmatpush2.bf16.msra.mxu0 0
          %996 = vmatprep.subr.bf16.mxu0 0
          %997 = vmatpush2.bf16.msra.mxu0 0
          %998 = vmatprep.subr.bf16.mxu0 0
          %999 = vmatpush2.bf16.msra.mxu0 0
          %1000 = vmatprep.subr.bf16.mxu0 0
          %1001 = vmatpush2.bf16.msra.mxu0 0
          %1002 = vmatprep.subr.bf16.mxu0 0
          %1003 = vmatpush2.bf16.msra.mxu0 0
          %1004 = vmatprep.mubr.bf16.mxu0 0
          %1005 = vmatmul.mubr.bf16.gmra.mxu0 %v967
          %v1006 = vpop.f32.mrf.mxu0
          %v1007 = vadd.f32 0.0, %v1006
          %v1008 = vpop.f32.mrf.mxu0
          %v1009 = vpop.f32.mrf.mxu0
          %v1010 = vpop.f32.mrf.mxu0
          %1011 = vdwg.mxu0
          %v1013 = vsel %vm400, %v958, 0
          %v1016 = vsel %vm725, %v962, 0
          %1018 = vmatprep.subr.bf16.mxu0 0
          %1019 = vmatpush1.bf16.msra.mxu0 0
          %1020 = vmatprep.subr.bf16.mxu0 0
          %1021 = vmatpush1.bf16.msra.mxu0 0
          %1022 = vmatprep.subr.bf16.mxu0 0
          %1023 = vmatpush1.bf16.msra.mxu0 0
          %1024 = vmatprep.subr.bf16.mxu0 0
          %1025 = vmatpush1.bf16.msra.mxu0 0
          %1026 = vmatprep.subr.bf16.mxu0 0
          %1027 = vmatpush1.bf16.msra.mxu0 0
          %1028 = vmatprep.subr.bf16.mxu0 0
          %1029 = vmatpush1.bf16.msra.mxu0 0
          %1030 = vmatprep.subr.bf16.mxu0 0
          %1031 = vmatpush1.bf16.msra.mxu0 0
          %1032 = vmatprep.subr.bf16.mxu0 0
          %1033 = vmatpush1.bf16.msra.mxu0 %v1016
          %1034 = vmatprep.subr.bf16.mxu0 0
          %1035 = vmatpush2.bf16.msra.mxu0 0
          %1036 = vmatprep.subr.bf16.mxu0 0
          %1037 = vmatpush2.bf16.msra.mxu0 0
          %1038 = vmatprep.subr.bf16.mxu0 0
          %1039 = vmatpush2.bf16.msra.mxu0 0
          %1040 = vmatprep.subr.bf16.mxu0 0
          %1041 = vmatpush2.bf16.msra.mxu0 0
          %1042 = vmatprep.subr.bf16.mxu0 0
          %1043 = vmatpush2.bf16.msra.mxu0 0
          %1044 = vmatprep.subr.bf16.mxu0 0
          %1045 = vmatpush2.bf16.msra.mxu0 0
          %1046 = vmatprep.subr.bf16.mxu0 0
          %1047 = vmatpush2.bf16.msra.mxu0 0
          %1048 = vmatprep.subr.bf16.mxu0 0
          %1049 = vmatpush2.bf16.msra.mxu0 0
          %1050 = vmatprep.mubr.bf16.mxu0 0
          %1051 = vmatmul.mubr.bf16.gmra.mxu0 %v1013
          %v1052 = vpop.f32.mrf.mxu0
          %v1053 = vadd.f32 %v1007, %v1052
          %v1054 = vpop.f32.mrf.mxu0
          %v1055 = vpop.f32.mrf.mxu0
          %v1056 = vpop.f32.mrf.mxu0
          %1057 = vdwg.mxu0
          %v1059 = vsel %vm400, %v960, 0
          %v1062 = vsel %vm725, %v964, 0
          %1064 = vmatprep.subr.bf16.mxu0 0
          %1065 = vmatpush1.bf16.msra.mxu0 0
          %1066 = vmatprep.subr.bf16.mxu0 0
          %1067 = vmatpush1.bf16.msra.mxu0 0
          %1068 = vmatprep.subr.bf16.mxu0 0
          %1069 = vmatpush1.bf16.msra.mxu0 0
          %1070 = vmatprep.subr.bf16.mxu0 0
          %1071 = vmatpush1.bf16.msra.mxu0 0
          %1072 = vmatprep.subr.bf16.mxu0 0
          %1073 = vmatpush1.bf16.msra.mxu0 0
          %1074 = vmatprep.subr.bf16.mxu0 0
          %1075 = vmatpush1.bf16.msra.mxu0 0
          %1076 = vmatprep.subr.bf16.mxu0 0
          %1077 = vmatpush1.bf16.msra.mxu0 0
          %1078 = vmatprep.subr.bf16.mxu0 0
          %1079 = vmatpush1.bf16.msra.mxu0 %v1062
          %1080 = vmatprep.subr.bf16.mxu0 0
          %1081 = vmatpush2.bf16.msra.mxu0 0
          %1082 = vmatprep.subr.bf16.mxu0 0
          %1083 = vmatpush2.bf16.msra.mxu0 0
          %1084 = vmatprep.subr.bf16.mxu0 0
          %1085 = vmatpush2.bf16.msra.mxu0 0
          %1086 = vmatprep.subr.bf16.mxu0 0
          %1087 = vmatpush2.bf16.msra.mxu0 0
          %1088 = vmatprep.subr.bf16.mxu0 0
          %1089 = vmatpush2.bf16.msra.mxu0 0
          %1090 = vmatprep.subr.bf16.mxu0 0
          %1091 = vmatpush2.bf16.msra.mxu0 0
          %1092 = vmatprep.subr.bf16.mxu0 0
          %1093 = vmatpush2.bf16.msra.mxu0 0
          %1094 = vmatprep.subr.bf16.mxu0 0
          %1095 = vmatpush2.bf16.msra.mxu0 0
          %1096 = vmatprep.mubr.bf16.mxu0 0
          %1097 = vmatmul.mubr.bf16.gmra.mxu0 %v1059
          %v1098 = vpop.f32.mrf.mxu0
          %v1099 = vadd.f32 0.0, %v1098
          %v1100 = vpop.f32.mrf.mxu0
          %v1101 = vpop.f32.mrf.mxu0
          %v1102 = vpop.f32.mrf.mxu0
          %1103 = vdwg.mxu0
          %v1104 = vadd.f32 %v1053, %v1099
          %v1106 = vsel %vm400, %v961, 0
          %v1109 = vsel %vm725, %v965, 0
          %1111 = vmatprep.subr.bf16.mxu0 0
          %1112 = vmatpush1.bf16.msra.mxu0 0
          %1113 = vmatprep.subr.bf16.mxu0 0
          %1114 = vmatpush1.bf16.msra.mxu0 0
          %1115 = vmatprep.subr.bf16.mxu0 0
          %1116 = vmatpush1.bf16.msra.mxu0 0
          %1117 = vmatprep.subr.bf16.mxu0 0
          %1118 = vmatpush1.bf16.msra.mxu0 0
          %1119 = vmatprep.subr.bf16.mxu0 0
          %1120 = vmatpush1.bf16.msra.mxu0 0
          %1121 = vmatprep.subr.bf16.mxu0 0
          %1122 = vmatpush1.bf16.msra.mxu0 0
          %1123 = vmatprep.subr.bf16.mxu0 0
          %1124 = vmatpush1.bf16.msra.mxu0 0
          %1125 = vmatprep.subr.bf16.mxu0 0
          %1126 = vmatpush1.bf16.msra.mxu0 %v1109
          %1127 = vmatprep.subr.bf16.mxu0 0
          %1128 = vmatpush2.bf16.msra.mxu0 0
          %1129 = vmatprep.subr.bf16.mxu0 0
          %1130 = vmatpush2.bf16.msra.mxu0 0
          %1131 = vmatprep.subr.bf16.mxu0 0
          %1132 = vmatpush2.bf16.msra.mxu0 0
          %1133 = vmatprep.subr.bf16.mxu0 0
          %1134 = vmatpush2.bf16.msra.mxu0 0
          %1135 = vmatprep.subr.bf16.mxu0 0
          %1136 = vmatpush2.bf16.msra.mxu0 0
          %1137 = vmatprep.subr.bf16.mxu0 0
          %1138 = vmatpush2.bf16.msra.mxu0 0
          %1139 = vmatprep.subr.bf16.mxu0 0
          %1140 = vmatpush2.bf16.msra.mxu0 0
          %1141 = vmatprep.subr.bf16.mxu0 0
          %1142 = vmatpush2.bf16.msra.mxu0 0
          %1143 = vmatprep.mubr.bf16.mxu0 0
          %1144 = vmatmul.mubr.bf16.gmra.mxu0 %v1106
          %v1145 = vpop.f32.mrf.mxu0
          %v1146 = vadd.f32 0.0, %v1145
          %v1147 = vpop.f32.mrf.mxu0
          %v1148 = vpop.f32.mrf.mxu0
          %v1149 = vpop.f32.mrf.mxu0
          %1150 = vdwg.mxu0
          %v1151 = vadd.f32 %v1104, %v1146
          %v1152 = vld [vmem:[%s5] sm:$0x1]
          %v1154 = vlaneseq
          %v1155 = vshrl.u32 %v1154, 7
          %v1156 = vsub.s32 0, %v1155
          %v1157 = vrot.slane %v1152, %v1156
          %v1159 = vadd.f32 %v1151, %v1157
          %vm1160 = vcmask 261120
          %1161 = vst.msk [vmem:[%s338] sm:$0xff] %vm1160, %v1159
        $region52: #{multi_head_attention.3} parent=43 // pred_fallthru
          _
        %s1162 = sand.u32 %s203, 1
        %s1163 = scalar_lea.sflag [#allocation6], %s1162
        %s1164 = sand.u32 %s203, 1
        %s1165 = smul.addr %s1164, 8
        %s1166 = scalar_lea.vmem [#allocation5], %s1165
        // Predicated region
        $region53: #{multi_head_attention.3} parent=43 // pred_check
          %p1167 = pneg %p213
        $region54: #{multi_head_attention.3} parent=43 // pred_check_branch
          %1169 = sbr.rel (%p1167) target = $region56
        $region55: #{multi_head_attention.3} parent=43 // pred_region
          %s1171 = ssub.s32 128, 128
          %1172 = vsyncadd %s1163, %s1171
          %s1173 = sadd.s32 %s26, %s25
          %s1174 = smul.addr %s1173, 128
          %s1175 = scalar_lea.hbm %s6, %s1174
          %s1177 = sshll.u32 %s1166, 4
          %s1178 = int_to_ptr.vmem [resolvable:$true] %s1177
          %1180 = dma.vmem_to_hbm [thread:$0]  %s1178, 128, %s1175, %s1163
        $region56: #{multi_head_attention.3} parent=43 // pred_fallthru
          _
      $region44: #{multi_head_attention.3} parent=5 // pred_fallthru
        _
      %p1181 = scmp.le.s32.totalorder 2, %s15
      // Predicated region
      $region57: #{multi_head_attention.3} parent=5 // pred_check
        %p1182 = pneg %p1181
      $region58: #{multi_head_attention.3} parent=5 // pred_check_branch
        %1184 = sbr.rel (%p1182) target = $region60
      $region59: #{multi_head_attention.3} parent=5 // pred_region
        %s1185 = ssub.s32 %s15, 2
        // Predicated region
        $region61: #{multi_head_attention.3} parent=59 // pred_check
          %p1186 = pneg %p219
        $region62: #{multi_head_attention.3} parent=59 // pred_check_branch
          %1188 = sbr.rel (%p1186) target = $region64
        $region63: #{multi_head_attention.3} parent=59 // pred_region
          %s1189 = sand.u32 %s204, 1
          %s1190 = scalar_lea.sflag [#allocation6], %s1189
          %s1191 = sand.u32 %s204, 1
          %s1192 = smul.addr %s1191, 8
          %s1193 = scalar_lea.vmem [#allocation5], %s1192
          %1194 = dma.done %s1190, 128
        $region64: #{multi_head_attention.3} parent=59 // pred_fallthru
          _
      $region60: #{multi_head_attention.3} parent=5 // pred_fallthru
        _
    $region6: #{multi_head_attention.3} parent=1 // loop_footer
      %s19 = sadd.s32 1, %s15
    $region7: #{multi_head_attention.3} parent=1 // loop_footer_branch
      %14 = sbr.rel target = $region3
    $region8: #{multi_head_attention.3} parent=1 // loop_exit
      _
    %1195 = vsyncpa [#allocation6], 1
    %s1196 = scalar_lea.sflag [#allocation6], 1
    %1197 = vsyncpa %s1196, 1

</llo_original>
